<compile_context>
chip_gen: v7x
topology: tpu7x:2x2x1
jax: 0.10.0
libtpu: 0.0.40
codegen_flags: <defaults>
</compile_context>

<pallas_src>
import math
import functools

import jax
import jax.numpy as jnp
from jax.experimental import pallas as pl
from jax.experimental.pallas import tpu as pltpu

PHI = (1.0 + math.sqrt(5.0)) / 2.0
NUM_LAYERS = 3
LN_EPS = 1e-8
AMP_EPS = 1e-8
# amp < 0.1  <=>  sqrt(fr^2 + fi^2 + 1e-8) < 0.1  <=>  fr^2 + fi^2 < 0.01 - 1e-8
COLLAPSE_SQ_THRESH = 0.01 - AMP_EPS


def _round_up(a, b):
    return ((a + b - 1) // b) * b


def _phase_space_kernel(x_ref, cmat_ref, cfmat_ref, exc_ref, real_ref, imag_ref,
                        *, num_layers, dim):
    """Everything per-layer is folded into 4 small MXU matmuls.

    cmat : (2, D, K)   cmat[0] = [cos_l, sin_l, 0..] / D          (row means)
                       cmat[1] = [cos_l^2, sin_l^2, 0..] / D      (second moments)
    cfmat: (2, K, 2D)  cfmat[0] = x-coefficients [c*gc; -s*gs | c*gs;  s*gc; 0..]
                       cfmat[1] = offsets        [gc;    -gs;  bias_fr | gs; gc; bias_fi; 0..]
    exc  : (1, D)      exp(energy_levels) * excitation_factor
    """
    L = num_layers
    D = dim
    # HIGHEST keeps results within the 1e-4 tolerance of the f32 reference
    # (default bf16 rounding of the small K=2L+1 matmuls would give ~1e-3 error).
    hi = jax.lax.Precision.HIGHEST

    x = x_ref[...].astype(jnp.float32)                                       # (tm, D)

    # Per-layer LayerNorm statistics on the MXU (replaces 12 XLU reductions).
    # NOTE(v5e): x*x adds a third VMEM store stream next to the two outputs;
    # chunk it if stores ever become the binding slot there.
    mu = jnp.dot(x, cmat_ref[0], preferred_element_type=jnp.float32, precision=hi)   # (tm, K)
    m2 = jnp.dot(x * x, cmat_ref[1], preferred_element_type=jnp.float32, precision=hi)
    inv = jax.lax.rsqrt(jnp.maximum(m2 - mu * mu, 0.0) + LN_EPS)                     # (tm, K)

    # Scale + rotate accumulation on the MXU:
    #   fr = x * (R @ C1r) + (A @ C2r),   fi = x * (R @ C1i) + (A @ C2i)
    # R = inv (junk columns >= 2L hit all-zero rows of C1); A = [-mu*inv, 1 (bias row), 0..].
    col = jax.lax.broadcasted_iota(jnp.int32, inv.shape, 1)
    a_mat = jnp.where(col == 2 * L, 1.0, -mu * inv)                                  # (tm, K)
    coef = jnp.dot(inv, cfmat_ref[0], preferred_element_type=jnp.float32, precision=hi)   # (tm, 2D)
    off = jnp.dot(a_mat, cfmat_ref[1], preferred_element_type=jnp.float32, precision=hi)  # (tm, 2D)

    fr = x * coef[:, :D] + off[:, :D]
    fi = x * coef[:, D:] + off[:, D:]

    # Collapse excitation (select, not cmp-cvt*+) + renormalize (rsqrt on the EUP).
    exc = exc_ref[...]                                                               # (1, D)
    collapse = (fr * fr + fi * fi) < COLLAPSE_SQ_THRESH
    fr = jnp.where(collapse, fr + exc, fr)
    fi = jnp.where(collapse, fi + exc, fi)
    inv_norm = jax.lax.rsqrt(fr * fr + fi * fi + AMP_EPS)
    real_ref[...] = (fr * inv_norm).astype(real_ref.dtype)
    imag_ref[...] = (fi * inv_norm).astype(imag_ref.dtype)


def _fold_params(params, D):
    """Fold all per-layer constants into the matmul operands (tiny O(L*D) work)."""
    L = params["layer_phases"].shape[0]
    lp = params["layer_phases"].astype(jnp.float32)
    iw = params["interference_weights"].astype(jnp.float32)
    w = params["ln_weight"].astype(jnp.float32)
    b = params["ln_bias"].astype(jnp.float32)
    en = params["energy_levels"].astype(jnp.float32)
    ef = params["excitation_factor"].astype(jnp.float32)

    ang = jnp.tanh(lp) * (math.pi * PHI)                       # (L, D)
    c = jnp.cos(ang)
    s = jnp.sin(ang)
    itf = jnp.tanh(iw)
    li = jnp.arange(L, dtype=jnp.float32)
    pc = jnp.cos(2.0 * math.pi * li / L)[:, None]              # (L, 1)
    ps = jnp.sin(2.0 * math.pi * li / L)[:, None]
    g = w * itf
    gc = g * pc                                                # w * itf * cos(2πl/L)
    gs = g * ps                                                # w * itf * sin(2πl/L)
    bias_fr = jnp.sum(b * itf * (pc - ps), axis=0)             # (D,)
    bias_fi = jnp.sum(b * itf * (ps + pc), axis=0)
    exc = (jnp.exp(en) * ef).reshape(1, D)

    K = _round_up(2 * L + 1, 8)                                # contraction dim (2L + bias row)

    cmean = jnp.zeros((D, K), jnp.float32)
    cmean = cmean.at[:, :L].set(c.T / D).at[:, L:2 * L].set(s.T / D)
    csq = jnp.zeros((D, K), jnp.float32)
    csq = csq.at[:, :L].set((c * c).T / D).at[:, L:2 * L].set((s * s).T / D)
    cmat = jnp.stack([cmean, csq], axis=0)                     # (2, D, K)

    coef_r = jnp.concatenate([c * gc, -s * gs], axis=0)        # (2L, D)
    coef_i = jnp.concatenate([c * gs, s * gc], axis=0)
    off_r = jnp.concatenate([gc, -gs, bias_fr[None]], axis=0)  # (2L+1, D)
    off_i = jnp.concatenate([gs, gc, bias_fi[None]], axis=0)
    coef_mat = jnp.zeros((K, 2 * D), jnp.float32)
    coef_mat = coef_mat.at[:2 * L, :D].set(coef_r).at[:2 * L, D:].set(coef_i)
    off_mat = jnp.zeros((K, 2 * D), jnp.float32)
    off_mat = off_mat.at[:2 * L + 1, :D].set(off_r).at[:2 * L + 1, D:].set(off_i)
    cfmat = jnp.stack([coef_mat, off_mat], axis=0)             # (2, K, 2D)

    return L, K, cmat, cfmat, exc


def _select_tile(M, D, tile_hint):
    """Pick a row tile that divides M (no pad/slice HBM passes), VMEM-capped."""
    try:
        info = pltpu.get_tpu_info()
        cap_bytes = int(getattr(info, "vmem_capacity_bytes", 64 * 1024 * 1024))
    except Exception:
        cap_bytes = 64 * 1024 * 1024                            # safe on v5e/v6e/v7x
    vmem_limit = min(int(cap_bytes * 3 // 4), 96 * 1024 * 1024)

    # in/out double-buffered (3*2) + ~10 row-wide f32 temps (x^2, coef/off at 2D
    # wide, fr, fi, epilogue scratch); small constant operands get ~2 MiB headroom.
    per_row = (6 + 10) * D * 4
    usable = max(vmem_limit - 2 * 1024 * 1024, 1 * 1024 * 1024)
    cap_rows = max(8, (usable // per_row) // 8 * 8)
    target = max(8, min(max(8, int(tile_hint)), cap_rows))

    if M <= target:
        return M, 1, False, vmem_limit                          # single full block

    divs = [t for t in range(8, target + 1, 8) if M % t == 0]
    if divs:
        # Prefer an even step count >= 4 (v7x: 2 TCs, keeps the pipeline fed),
        # but never shrink below ~256 rows (v5e HBM roofline measurement).
        good = [t for t in divs if (M // t) >= 4 and (M // t) % 2 == 0]
        if good and max(good) >= min(256, target):
            tile = max(good)
        else:
            tile = max(divs)
        return tile, M // tile, False, vmem_limit

    # Rare ragged fallback (M not a multiple of 8): pad + slice.
    tile = max(8, target - target % 8)
    steps = pl.cdiv(M, tile)
    return tile, steps, True, vmem_limit


def enhanced_dynamic_phase_space(x, params, pad_token_id=0, *, tile_m=512):
    """x: (B, S, D) float32. Returns (final_real, final_imag), each (B, S, D)."""
    del pad_token_id  # accepted for API parity; the PyTorch forward never uses it
    B, S, D = x.shape
    M = B * S
    x2d = x.reshape(M, D)

    L, K, cmat, cfmat, exc = _fold_params(params, D)
    tile, steps, needs_pad, vmem_limit = _select_tile(M, D, tile_m)

    if needs_pad:
        Mp = steps * tile
        x2d = jnp.pad(x2d, ((0, Mp - M), (0, 0)))
    else:
        Mp = M

    kernel = functools.partial(_phase_space_kernel, num_layers=L, dim=D)
    out_struct = jax.ShapeDtypeStruct((Mp, D), x.dtype)

    real2d, imag2d = pl.pallas_call(
        kernel,
        out_shape=(out_struct, out_struct),
        grid_spec=pltpu.PrefetchScalarGridSpec(
            num_scalar_prefetch=0,
            grid=(steps,),
            in_specs=[
                pl.BlockSpec((tile, D), lambda i: (i, 0)),            # x rows
                pl.BlockSpec((2, D, K), lambda i: (0, 0, 0)),         # stats matrices
                pl.BlockSpec((2, K, 2 * D), lambda i: (0, 0, 0)),     # coef / offset matrices
                pl.BlockSpec((1, D), lambda i: (0, 0)),               # excitation
            ],
            out_specs=[
                pl.BlockSpec((tile, D), lambda i: (i, 0)),
                pl.BlockSpec((tile, D), lambda i: (i, 0)),
            ],
        ),
        compiler_params=pltpu.CompilerParams(
            dimension_semantics=("parallel",),
            vmem_limit_bytes=int(vmem_limit)),
    )(x2d, cmat, cfmat, exc)

    if needs_pad:
        real2d = real2d[:M]
        imag2d = imag2d[:M]
    return real2d.reshape(B, S, D), imag2d.reshape(B, S, D)


def _reference_forward(x, params):
    """Plain-JAX mirror of the PyTorch forward (unfolded, for verification)."""
    L = params["layer_phases"].shape[0]
    phase_angles = jnp.tanh(params["layer_phases"]) * (math.pi * PHI)
    interf = jnp.tanh(params["interference_weights"])
    fr = jnp.zeros_like(x)
    fi = jnp.zeros_like(x)
    for l in range(L):
        real = x * jnp.cos(phase_angles[l])
        imag = x * jnp.sin(phase_angles[l])

        def ln(v):
            mu = jnp.mean(v, axis=-1, keepdims=True)
            var = jnp.mean((v - mu) ** 2, axis=-1, keepdims=True)
            return ((v - mu) / jnp.sqrt(var + LN_EPS)
                    * params["ln_weight"][l] + params["ln_bias"][l])

        real = ln(real) * interf[l]
        imag = ln(imag) * interf[l]
        ang = 2.0 * math.pi * l / L
        fr = fr + real * math.cos(ang) - imag * math.sin(ang)
        fi = fi + real * math.sin(ang) + imag * math.cos(ang)
    amp = jnp.sqrt(fr ** 2 + fi ** 2 + 1e-8)
    collapsing = (amp < 0.1).astype(jnp.float32)
    exc = jnp.exp(params["energy_levels"]) * params["excitation_factor"]
    fr = fr + collapsing * exc
    fi = fi + collapsing * exc
    norm = jnp.sqrt(fr ** 2 + fi ** 2 + 1e-8)
    return fr / norm, fi / norm


def init_params_default(dim, num_layers=NUM_LAYERS):
    """Mirrors the module's __init__ (phases=0, weight=1, bias=0); the module's
    random interference_weights are replaced by deterministic small values."""
    return {
        "layer_phases": jnp.zeros((num_layers, dim), jnp.float32),
        "interference_weights": 0.02 * jnp.sin(
            jnp.arange(num_layers * dim, dtype=jnp.float32)).reshape(num_layers, dim),
        "ln_weight": jnp.ones((num_layers, dim), jnp.float32),
        "ln_bias": jnp.zeros((num_layers, dim), jnp.float32),
        "energy_levels": jnp.linspace(0.0, 1.0, dim, dtype=jnp.float32),
        "excitation_factor": jnp.float32(0.1),
    }


def init_params_random(key, dim, num_layers=NUM_LAYERS):
    """Randomized parameters so every folded path (phases, bias, rotation) is exercised."""
    k0, k1, k2, k3 = jax.random.split(key, 4)
    return {
        "layer_phases": 0.5 * jax.random.normal(k0, (num_layers, dim), jnp.float32),
        "interference_weights": jax.random.normal(k1, (num_layers, dim), jnp.float32),
        "ln_weight": 1.0 + 0.1 * jax.random.normal(k2, (num_layers, dim), jnp.float32),
        "ln_bias": 0.1 * jax.random.normal(k3, (num_layers, dim), jnp.float32),
        "energy_levels": jnp.linspace(0.0, 1.0, dim, dtype=jnp.float32),
        "excitation_factor": jnp.float32(0.1),
    }


if __name__ == "__main__":
    B, S, D = 2, 8, 128
    key = jax.random.PRNGKey(0)
    kx, kp = jax.random.split(key)
    x = jax.random.normal(kx, (B, S, D), jnp.float32)

    for params in (init_params_default(D), init_params_random(kp, D)):
        real, imag = enhanced_dynamic_phase_space(x, params, pad_token_id=0)
        real = jax.block_until_ready(real)
        imag = jax.block_until_ready(imag)

        ref_r, ref_i = _reference_forward(x, params)
        assert jnp.allclose(real, ref_r, atol=1e-4, rtol=1e-4)
        assert jnp.allclose(imag, ref_i, atol=1e-4, rtol=1e-4)

    print("KERNEL_OK")
</pallas_src>

<mosaic_0001>
module attributes {stable_mosaic.version = 11 : i64} {
  func.func @_phase_space_kernel(%arg0: i32, %arg1: memref<16x128xf32, #tpu.memory_space<vmem>>, %arg2: memref<2x128x8xf32, #tpu.memory_space<vmem>>, %arg3: memref<2x8x256xf32, #tpu.memory_space<vmem>>, %arg4: memref<1x128xf32, #tpu.memory_space<vmem>>, %arg5: memref<16x128xf32, #tpu.memory_space<vmem>>, %arg6: memref<16x128xf32, #tpu.memory_space<vmem>>) attributes {dimension_semantics = [#tpu.dimension_semantics<parallel>], iteration_bounds = array<i64: 1>, scalar_prefetch = 0 : i64, scratch_operands = 0 : i64, tpu.core_type = #tpu.core_type<tc>, window_params = [{transform_indices = @transform_0, window_bounds = array<i64: 16, 128>}, {pipeline_mode = #tpu.pipeline_mode<synchronous>, transform_indices = @transform_1, window_bounds = array<i64: 2, 128, 8>}, {pipeline_mode = #tpu.pipeline_mode<synchronous>, transform_indices = @transform_2, window_bounds = array<i64: 2, 8, 256>}, {pipeline_mode = #tpu.pipeline_mode<synchronous>, transform_indices = @transform_3, window_bounds = array<i64: 1, 128>}, {transform_indices = @transform_4, window_bounds = array<i64: 16, 128>}, {transform_indices = @transform_5, window_bounds = array<i64: 16, 128>}]} {
    %c0 = arith.constant 0 : index
    %c0_0 = arith.constant 0 : index
    %0 = vector.load %arg1[%c0, %c0_0] : memref<16x128xf32, #tpu.memory_space<vmem>>, vector<16x128xf32>
    %c0_1 = arith.constant 0 : index
    %c0_2 = arith.constant 0 : index
    %c0_3 = arith.constant 0 : index
    %1 = vector.load %arg2[%c0_1, %c0_2, %c0_3] : memref<2x128x8xf32, #tpu.memory_space<vmem>>, vector<1x128x8xf32>
    %2 = vector.shape_cast %1 : vector<1x128x8xf32> to vector<128x8xf32>
    %cst = arith.constant dense<0.000000e+00> : vector<16x8xf32>
    %3 = tpu.matmul %0, %2, %cst {dimension_numbers = #tpu.dot_dimension_numbers<[1], [0], [0], [1], [0, 0, 1, 1], [], []>, precision = #tpu.contract_precision<fp32>} : vector<16x128xf32>, vector<128x8xf32>, vector<16x8xf32> -> vector<16x8xf32>
    %4 = arith.mulf %0, %0 : vector<16x128xf32>
    %c1 = arith.constant 1 : index
    %c0_4 = arith.constant 0 : index
    %c0_5 = arith.constant 0 : index
    %5 = vector.load %arg2[%c1, %c0_4, %c0_5] : memref<2x128x8xf32, #tpu.memory_space<vmem>>, vector<1x128x8xf32>
    %6 = vector.shape_cast %5 : vector<1x128x8xf32> to vector<128x8xf32>
    %cst_6 = arith.constant dense<0.000000e+00> : vector<16x8xf32>
    %7 = tpu.matmul %4, %6, %cst_6 {dimension_numbers = #tpu.dot_dimension_numbers<[1], [0], [0], [1], [0, 0, 1, 1], [], []>, precision = #tpu.contract_precision<fp32>} : vector<16x128xf32>, vector<128x8xf32>, vector<16x8xf32> -> vector<16x8xf32>
    %8 = arith.mulf %3, %3 : vector<16x8xf32>
    %9 = arith.subf %7, %8 : vector<16x8xf32>
    %cst_7 = arith.constant 0.000000e+00 : f32
    %10 = vector.broadcast %cst_7 : f32 to vector<16x8xf32>
    %11 = arith.maximumf %9, %10 : vector<16x8xf32>
    %cst_8 = arith.constant 9.99999993E-9 : f32
    %12 = vector.broadcast %cst_8 : f32 to vector<16x8xf32>
    %13 = arith.addf %11, %12 : vector<16x8xf32>
    %14 = math.rsqrt %13 : vector<16x8xf32>
    %15 = tpu.iota {dimensions = array<i32: 1>} : vector<16x8xi32>
    %c6_i32 = arith.constant 6 : i32
    %16 = vector.broadcast %c6_i32 : i32 to vector<16x8xi32>
    %17 = arith.cmpi eq, %15, %16 : vector<16x8xi32>
    %cst_9 = arith.constant 0.000000e+00 : f32
    %18 = vector.broadcast %cst_9 : f32 to vector<16x8xf32>
    %19 = arith.subf %18, %3 : vector<16x8xf32>
    %20 = arith.mulf %19, %14 : vector<16x8xf32>
    %cst_10 = arith.constant 1.000000e+00 : f32
    %21 = vector.broadcast %cst_10 : f32 to vector<16x8xf32>
    %22 = arith.select %17, %21, %20 : vector<16x8xi1>, vector<16x8xf32>
    %c0_11 = arith.constant 0 : index
    %c0_12 = arith.constant 0 : index
    %c0_13 = arith.constant 0 : index
    %23 = vector.load %arg3[%c0_11, %c0_12, %c0_13] : memref<2x8x256xf32, #tpu.memory_space<vmem>>, vector<1x8x256xf32>
    %24 = vector.shape_cast %23 : vector<1x8x256xf32> to vector<8x256xf32>
    %cst_14 = arith.constant dense<0.000000e+00> : vector<16x256xf32>
    %25 = tpu.matmul %14, %24, %cst_14 {dimension_numbers = #tpu.dot_dimension_numbers<[1], [0], [0], [1], [0, 0, 1, 1], [], []>, precision = #tpu.contract_precision<fp32>} : vector<16x8xf32>, vector<8x256xf32>, vector<16x256xf32> -> vector<16x256xf32>
    %c1_15 = arith.constant 1 : index
    %c0_16 = arith.constant 0 : index
    %c0_17 = arith.constant 0 : index
    %26 = vector.load %arg3[%c1_15, %c0_16, %c0_17] : memref<2x8x256xf32, #tpu.memory_space<vmem>>, vector<1x8x256xf32>
    %27 = vector.shape_cast %26 : vector<1x8x256xf32> to vector<8x256xf32>
    %cst_18 = arith.constant dense<0.000000e+00> : vector<16x256xf32>
    %28 = tpu.matmul %22, %27, %cst_18 {dimension_numbers = #tpu.dot_dimension_numbers<[1], [0], [0], [1], [0, 0, 1, 1], [], []>, precision = #tpu.contract_precision<fp32>} : vector<16x8xf32>, vector<8x256xf32>, vector<16x256xf32> -> vector<16x256xf32>
    %29 = vector.extract_strided_slice %25 {offsets = [0, 0], sizes = [16, 128], strides = [1, 1]} : vector<16x256xf32> to vector<16x128xf32>
    %30 = arith.mulf %0, %29 : vector<16x128xf32>
    %31 = vector.extract_strided_slice %28 {offsets = [0, 0], sizes = [16, 128], strides = [1, 1]} : vector<16x256xf32> to vector<16x128xf32>
    %32 = arith.addf %30, %31 : vector<16x128xf32>
    %33 = vector.extract_strided_slice %25 {offsets = [0, 128], sizes = [16, 128], strides = [1, 1]} : vector<16x256xf32> to vector<16x128xf32>
    %34 = arith.mulf %0, %33 : vector<16x128xf32>
    %35 = vector.extract_strided_slice %28 {offsets = [0, 128], sizes = [16, 128], strides = [1, 1]} : vector<16x256xf32> to vector<16x128xf32>
    %36 = arith.addf %34, %35 : vector<16x128xf32>
    %c0_19 = arith.constant 0 : index
    %c0_20 = arith.constant 0 : index
    %37 = vector.load %arg4[%c0_19, %c0_20] : memref<1x128xf32, #tpu.memory_space<vmem>>, vector<1x128xf32>
    %38 = arith.mulf %32, %32 : vector<16x128xf32>
    %39 = arith.mulf %36, %36 : vector<16x128xf32>
    %40 = arith.addf %38, %39 : vector<16x128xf32>
    %cst_21 = arith.constant 9.999990e-03 : f32
    %41 = vector.broadcast %cst_21 : f32 to vector<16x128xf32>
    %42 = arith.cmpf olt, %40, %41 : vector<16x128xf32>
    %43 = vector.broadcast %37 : vector<1x128xf32> to vector<16x128xf32>
    %44 = arith.addf %32, %43 : vector<16x128xf32>
    %45 = arith.select %42, %44, %32 : vector<16x128xi1>, vector<16x128xf32>
    %46 = vector.broadcast %37 : vector<1x128xf32> to vector<16x128xf32>
    %47 = arith.addf %36, %46 : vector<16x128xf32>
    %48 = arith.select %42, %47, %36 : vector<16x128xi1>, vector<16x128xf32>
    %49 = arith.mulf %45, %45 : vector<16x128xf32>
    %50 = arith.mulf %48, %48 : vector<16x128xf32>
    %51 = arith.addf %49, %50 : vector<16x128xf32>
    %cst_22 = arith.constant 9.99999993E-9 : f32
    %52 = vector.broadcast %cst_22 : f32 to vector<16x128xf32>
    %53 = arith.addf %51, %52 : vector<16x128xf32>
    %54 = math.rsqrt %53 : vector<16x128xf32>
    %55 = arith.mulf %45, %54 : vector<16x128xf32>
    %c0_23 = arith.constant 0 : index
    %c0_24 = arith.constant 0 : index
    %56 = vector.load %arg5[%c0_23, %c0_24] : memref<16x128xf32, #tpu.memory_space<vmem>>, vector<16x128xf32>
    tpu.vector_store %arg5[%c0_23, %c0_24], %55 {strides = array<i32>} : memref<16x128xf32, #tpu.memory_space<vmem>>, vector<16x128xf32>,
    %57 = arith.mulf %48, %54 : vector<16x128xf32>
    %c0_25 = arith.constant 0 : index
    %c0_26 = arith.constant 0 : index
    %58 = vector.load %arg6[%c0_25, %c0_26] : memref<16x128xf32, #tpu.memory_space<vmem>>, vector<16x128xf32>
    tpu.vector_store %arg6[%c0_25, %c0_26], %57 {strides = array<i32>} : memref<16x128xf32, #tpu.memory_space<vmem>>, vector<16x128xf32>,
    return
  }
  func.func @transform_0(%arg0: i32) -> (i32, i32) {
    %c0_i32 = arith.constant 0 : i32
    %c0_i32_0 = arith.constant 0 : i32
    return %arg0, %c0_i32 : i32, i32
  }
  func.func @transform_1(%arg0: i32) -> (i32, i32, i32) {
    %c0_i32 = arith.constant 0 : i32
    %c0_i32_0 = arith.constant 0 : i32
    %c0_i32_1 = arith.constant 0 : i32
    %c0_i32_2 = arith.constant 0 : i32
    return %c0_i32, %c0_i32_0, %c0_i32_1 : i32, i32, i32
  }
  func.func @transform_2(%arg0: i32) -> (i32, i32, i32) {
    %c0_i32 = arith.constant 0 : i32
    %c0_i32_0 = arith.constant 0 : i32
    %c0_i32_1 = arith.constant 0 : i32
    %c0_i32_2 = arith.constant 0 : i32
    return %c0_i32, %c0_i32_0, %c0_i32_1 : i32, i32, i32
  }
  func.func @transform_3(%arg0: i32) -> (i32, i32) {
    %c0_i32 = arith.constant 0 : i32
    %c0_i32_0 = arith.constant 0 : i32
    %c0_i32_1 = arith.constant 0 : i32
    return %c0_i32, %c0_i32_0 : i32, i32
  }
  func.func @transform_4(%arg0: i32) -> (i32, i32) {
    %c0_i32 = arith.constant 0 : i32
    %c0_i32_0 = arith.constant 0 : i32
    return %arg0, %c0_i32 : i32, i32
  }
  func.func @transform_5(%arg0: i32) -> (i32, i32) {
    %c0_i32 = arith.constant 0 : i32
    %c0_i32_0 = arith.constant 0 : i32
    return %arg0, %c0_i32 : i32, i32
  }
}

</mosaic_0001>

<llo_original>
// kernel: tpu_custom_call.1
$region0: #{tpu_custom_call.1}
  #allocation0 [shape = 'u32[]', space=smem, size = 0x4, offset = 0x4, fixed_abs, tag = 'smem constant byte address 0x4 - core index']
  #allocation1 [shape = 'u32[144,128]{1,0:T(1,128)}', space=vmem, size = 0x12000, scoped, tag = 'internal scratch']
  %s0 = inlined_call_operand.vmem [shape: f32[16,128], index: 0, kind: input, shape index: {}]
  %s1 = inlined_call_operand.vmem [shape: f32[2,128,8], index: 1, kind: input, shape index: {}]
  %s2 = inlined_call_operand.vmem [shape: f32[2,8,256], index: 2, kind: input, shape index: {}]
  %s3 = inlined_call_operand.vmem [shape: f32[1,128], index: 3, kind: input, shape index: {}]
  %s4 = inlined_call_operand.hbm [shape: f32[16,128], index: 4, kind: output, shape index: {0}]
  %s5 = inlined_call_operand.hbm [shape: f32[16,128], index: 5, kind: output, shape index: {1}]
  %6 = xla_tuple %s4, %s5
  %s7 = sld [smem:[#allocation0]]
  $region34: #{tpu_custom_call.1} parent=0
    _
  %s9 = ssub.s32 1, %s7
  %s10 = scalar_select 0, %s9, %s7
  $region1: #{tpu_custom_call.1} parent=0
    #allocation2 [shape = 'u8[8192]{0}', space=vmem, size = 0x2000, scoped, tag = 'output window, operand 0, single buffered']
    #allocation3 [shape = 's32[1]{0}', space=sflag, size = 0x4, scoped, tag = 'scoped memory for tpu_custom_call.1']
    #allocation4 [shape = 'u8[8192]{0}', space=vmem, size = 0x2000, scoped, tag = 'output window, operand 1, single buffered']
    #allocation5 [shape = 's32[1]{0}', space=sflag, size = 0x4, scoped, tag = 'scoped memory for tpu_custom_call.1']
    %11 = vsyncpa [#allocation3], 0
    %12 = vsyncpa [#allocation5], 0
    // Predicated region
    $region2: #{tpu_custom_call.1} parent=1 // pred_check
      _
    $region3: #{tpu_custom_call.1} parent=1 // pred_check_branch
      %14 = sbr.rel (0) target = $region5
    $region4: #{tpu_custom_call.1} parent=1 // pred_region
      _
    $region5: #{tpu_custom_call.1} parent=1 // pred_fallthru
      _
    // Predicated region
    $region6: #{tpu_custom_call.1} parent=1 // pred_check
      _
    $region7: #{tpu_custom_call.1} parent=1 // pred_check_branch
      %16 = sbr.rel (0) target = $region9
    $region8: #{tpu_custom_call.1} parent=1 // pred_region
      _
    $region9: #{tpu_custom_call.1} parent=1 // pred_fallthru
      _
    // Predicated region
    $region10: #{tpu_custom_call.1} parent=1 // pred_check
      _
    $region11: #{tpu_custom_call.1} parent=1 // pred_check_branch
      %18 = sbr.rel (0) target = $region13
    $region12: #{tpu_custom_call.1} parent=1 // pred_region
      _
    $region13: #{tpu_custom_call.1} parent=1 // pred_fallthru
      _
    // Predicated region
    $region14: #{tpu_custom_call.1} parent=1 // pred_check
      _
    $region15: #{tpu_custom_call.1} parent=1 // pred_check_branch
      %20 = sbr.rel (0) target = $region17
    $region16: #{tpu_custom_call.1} parent=1 // pred_region
      _
    $region17: #{tpu_custom_call.1} parent=1 // pred_fallthru
      _
    %v21 = vld [vmem:[%s0] sm:$0xff]
    %v22 = vld [vmem:[%s0 + $0x8] sm:$0xff]
    %v23 = vld [vmem:[%s1] sm:$0xff]
    %v24 = vld [vmem:[%s1 + $0x8] sm:$0xff]
    %v25 = vld [vmem:[%s1 + $0x10] sm:$0xff]
    %v26 = vld [vmem:[%s1 + $0x18] sm:$0xff]
    %v27 = vld [vmem:[%s1 + $0x20] sm:$0xff]
    %v28 = vld [vmem:[%s1 + $0x28] sm:$0xff]
    %v29 = vld [vmem:[%s1 + $0x30] sm:$0xff]
    %v30 = vld [vmem:[%s1 + $0x38] sm:$0xff]
    %v31 = vld [vmem:[%s1 + $0x40] sm:$0xff]
    %v32 = vld [vmem:[%s1 + $0x48] sm:$0xff]
    %v33 = vld [vmem:[%s1 + $0x50] sm:$0xff]
    %v34 = vld [vmem:[%s1 + $0x58] sm:$0xff]
    %v35 = vld [vmem:[%s1 + $0x60] sm:$0xff]
    %v36 = vld [vmem:[%s1 + $0x68] sm:$0xff]
    %v37 = vld [vmem:[%s1 + $0x70] sm:$0xff]
    %v38 = vld [vmem:[%s1 + $0x78] sm:$0xff]
    %39 = vmatprep.subr.mxu0 0.0
    %v40 = vand.u32 %v23, 4294901760
    %41 = vmatpush1.msra.mxu0 %v40
    %42 = vmatprep.subr.mxu0 0.0
    %v43 = vand.u32 %v24, 4294901760
    %44 = vmatpush1.msra.mxu0 %v43
    %45 = vmatprep.subr.mxu0 0.0
    %v46 = vand.u32 %v25, 4294901760
    %47 = vmatpush1.msra.mxu0 %v46
    %48 = vmatprep.subr.mxu0 0.0
    %v49 = vand.u32 %v26, 4294901760
    %50 = vmatpush1.msra.mxu0 %v49
    %51 = vmatprep.subr.mxu0 0.0
    %v52 = vand.u32 %v27, 4294901760
    %53 = vmatpush1.msra.mxu0 %v52
    %54 = vmatprep.subr.mxu0 0.0
    %v55 = vand.u32 %v28, 4294901760
    %56 = vmatpush1.msra.mxu0 %v55
    %57 = vmatprep.subr.mxu0 0.0
    %v58 = vand.u32 %v29, 4294901760
    %59 = vmatpush1.msra.mxu0 %v58
    %60 = vmatprep.subr.mxu0 0.0
    %v61 = vand.u32 %v30, 4294901760
    %62 = vmatpush1.msra.mxu0 %v61
    %63 = vmatprep.subr.mxu0 0.0
    %v64 = vand.u32 %v31, 4294901760
    %65 = vmatpush1.msra.mxu0 %v64
    %66 = vmatprep.subr.mxu0 0.0
    %v67 = vand.u32 %v32, 4294901760
    %68 = vmatpush1.msra.mxu0 %v67
    %69 = vmatprep.subr.mxu0 0.0
    %v70 = vand.u32 %v33, 4294901760
    %71 = vmatpush1.msra.mxu0 %v70
    %72 = vmatprep.subr.mxu0 0.0
    %v73 = vand.u32 %v34, 4294901760
    %74 = vmatpush1.msra.mxu0 %v73
    %75 = vmatprep.subr.mxu0 0.0
    %v76 = vand.u32 %v35, 4294901760
    %77 = vmatpush1.msra.mxu0 %v76
    %78 = vmatprep.subr.mxu0 0.0
    %v79 = vand.u32 %v36, 4294901760
    %80 = vmatpush1.msra.mxu0 %v79
    %81 = vmatprep.subr.mxu0 0.0
    %v82 = vand.u32 %v37, 4294901760
    %83 = vmatpush1.msra.mxu0 %v82
    %84 = vmatprep.subr.mxu0 0.0
    %v85 = vand.u32 %v38, 4294901760
    %86 = vmatpush1.msra.mxu0 %v85
    %87 = vmatprep.subr.mxu0 0.0
    %88 = vmatpush1.msra.mxu0 0.0
    %89 = vmatprep.subr.mxu0 0.0
    %90 = vmatpush1.msra.mxu0 0.0
    %91 = vmatprep.subr.mxu0 0.0
    %92 = vmatpush1.msra.mxu0 0.0
    %93 = vmatprep.subr.mxu0 0.0
    %94 = vmatpush1.msra.mxu0 0.0
    %95 = vmatprep.subr.mxu0 0.0
    %96 = vmatpush1.msra.mxu0 0.0
    %97 = vmatprep.subr.mxu0 0.0
    %98 = vmatpush1.msra.mxu0 0.0
    %99 = vmatprep.subr.mxu0 0.0
    %100 = vmatpush1.msra.mxu0 0.0
    %101 = vmatprep.subr.mxu0 0.0
    %102 = vmatpush1.msra.mxu0 0.0
    %103 = vmatprep.subr.mxu0 0.0
    %104 = vmatpush1.msra.mxu0 0.0
    %105 = vmatprep.subr.mxu0 0.0
    %106 = vmatpush1.msra.mxu0 0.0
    %107 = vmatprep.subr.mxu0 0.0
    %108 = vmatpush1.msra.mxu0 0.0
    %109 = vmatprep.subr.mxu0 0.0
    %110 = vmatpush1.msra.mxu0 0.0
    %111 = vmatprep.subr.mxu0 0.0
    %112 = vmatpush1.msra.mxu0 0.0
    %113 = vmatprep.subr.mxu0 0.0
    %114 = vmatpush1.msra.mxu0 0.0
    %115 = vmatprep.subr.mxu0 0.0
    %116 = vmatpush1.msra.mxu0 0.0
    %117 = vmatprep.subr.mxu0 0.0
    %118 = vmatpush1.msra.mxu0 0.0
    %119 = vmatprep.mubr.f32.mxu0 0.0
    %v120 = vand.u32 %v21, 4294901760
    %v121 = vsub.f32 %v21, %v120
    %v122 = vand.u32 %v121, 4294901760
    %v123 = vsub.f32 %v121, %v122
    %v124 = vand.u32 %v123, 4294901760
    %125 = vmatmul.mubr.f32.gmra.mrb[0].mxu0 %v124
    %v126 = vpop.f32.mrb[0].mxu0
    %v127 = vadd.f32 0.0, %v126
    %v128 = vpop.f32.mrb[0].mxu0
    %129 = vmatprep.mubr.f32.mxu0 0.0
    %v130 = vand.u32 %v22, 4294901760
    %v131 = vsub.f32 %v22, %v130
    %v132 = vand.u32 %v131, 4294901760
    %v133 = vsub.f32 %v131, %v132
    %v134 = vand.u32 %v133, 4294901760
    %135 = vmatmul.mubr.f32.gmra.mrb[0].mxu0 %v134
    %v136 = vpop.f32.mrb[0].mxu0
    %v137 = vadd.f32 0.0, %v136
    %v138 = vpop.f32.mrb[0].mxu0
    %139 = vdwg.mxu0
    %140 = vmatprep.subr.mxu0 0.0
    %v141 = vand.u32 %v23, 4294901760
    %v142 = vsub.f32 %v23, %v141
    %v143 = vand.u32 %v142, 4294901760
    %v144 = vsub.f32 %v142, %v143
    %v145 = vand.u32 %v144, 4294901760
    %146 = vmatpush1.msra.mxu0 %v145
    %147 = vmatprep.subr.mxu0 0.0
    %v148 = vand.u32 %v24, 4294901760
    %v149 = vsub.f32 %v24, %v148
    %v150 = vand.u32 %v149, 4294901760
    %v151 = vsub.f32 %v149, %v150
    %v152 = vand.u32 %v151, 4294901760
    %153 = vmatpush1.msra.mxu0 %v152
    %154 = vmatprep.subr.mxu0 0.0
    %v155 = vand.u32 %v25, 4294901760
    %v156 = vsub.f32 %v25, %v155
    %v157 = vand.u32 %v156, 4294901760
    %v158 = vsub.f32 %v156, %v157
    %v159 = vand.u32 %v158, 4294901760
    %160 = vmatpush1.msra.mxu0 %v159
    %161 = vmatprep.subr.mxu0 0.0
    %v162 = vand.u32 %v26, 4294901760
    %v163 = vsub.f32 %v26, %v162
    %v164 = vand.u32 %v163, 4294901760
    %v165 = vsub.f32 %v163, %v164
    %v166 = vand.u32 %v165, 4294901760
    %167 = vmatpush1.msra.mxu0 %v166
    %168 = vmatprep.subr.mxu0 0.0
    %v169 = vand.u32 %v27, 4294901760
    %v170 = vsub.f32 %v27, %v169
    %v171 = vand.u32 %v170, 4294901760
    %v172 = vsub.f32 %v170, %v171
    %v173 = vand.u32 %v172, 4294901760
    %174 = vmatpush1.msra.mxu0 %v173
    %175 = vmatprep.subr.mxu0 0.0
    %v176 = vand.u32 %v28, 4294901760
    %v177 = vsub.f32 %v28, %v176
    %v178 = vand.u32 %v177, 4294901760
    %v179 = vsub.f32 %v177, %v178
    %v180 = vand.u32 %v179, 4294901760
    %181 = vmatpush1.msra.mxu0 %v180
    %182 = vmatprep.subr.mxu0 0.0
    %v183 = vand.u32 %v29, 4294901760
    %v184 = vsub.f32 %v29, %v183
    %v185 = vand.u32 %v184, 4294901760
    %v186 = vsub.f32 %v184, %v185
    %v187 = vand.u32 %v186, 4294901760
    %188 = vmatpush1.msra.mxu0 %v187
    %189 = vmatprep.subr.mxu0 0.0
    %v190 = vand.u32 %v30, 4294901760
    %v191 = vsub.f32 %v30, %v190
    %v192 = vand.u32 %v191, 4294901760
    %v193 = vsub.f32 %v191, %v192
    %v194 = vand.u32 %v193, 4294901760
    %195 = vmatpush1.msra.mxu0 %v194
    %196 = vmatprep.subr.mxu0 0.0
    %v197 = vand.u32 %v31, 4294901760
    %v198 = vsub.f32 %v31, %v197
    %v199 = vand.u32 %v198, 4294901760
    %v200 = vsub.f32 %v198, %v199
    %v201 = vand.u32 %v200, 4294901760
    %202 = vmatpush1.msra.mxu0 %v201
    %203 = vmatprep.subr.mxu0 0.0
    %v204 = vand.u32 %v32, 4294901760
    %v205 = vsub.f32 %v32, %v204
    %v206 = vand.u32 %v205, 4294901760
    %v207 = vsub.f32 %v205, %v206
    %v208 = vand.u32 %v207, 4294901760
    %209 = vmatpush1.msra.mxu0 %v208
    %210 = vmatprep.subr.mxu0 0.0
    %v211 = vand.u32 %v33, 4294901760
    %v212 = vsub.f32 %v33, %v211
    %v213 = vand.u32 %v212, 4294901760
    %v214 = vsub.f32 %v212, %v213
    %v215 = vand.u32 %v214, 4294901760
    %216 = vmatpush1.msra.mxu0 %v215
    %217 = vmatprep.subr.mxu0 0.0
    %v218 = vand.u32 %v34, 4294901760
    %v219 = vsub.f32 %v34, %v218
    %v220 = vand.u32 %v219, 4294901760
    %v221 = vsub.f32 %v219, %v220
    %v222 = vand.u32 %v221, 4294901760
    %223 = vmatpush1.msra.mxu0 %v222
    %224 = vmatprep.subr.mxu0 0.0
    %v225 = vand.u32 %v35, 4294901760
    %v226 = vsub.f32 %v35, %v225
    %v227 = vand.u32 %v226, 4294901760
    %v228 = vsub.f32 %v226, %v227
    %v229 = vand.u32 %v228, 4294901760
    %230 = vmatpush1.msra.mxu0 %v229
    %231 = vmatprep.subr.mxu0 0.0
    %v232 = vand.u32 %v36, 4294901760
    %v233 = vsub.f32 %v36, %v232
    %v234 = vand.u32 %v233, 4294901760
    %v235 = vsub.f32 %v233, %v234
    %v236 = vand.u32 %v235, 4294901760
    %237 = vmatpush1.msra.mxu0 %v236
    %238 = vmatprep.subr.mxu0 0.0
    %v239 = vand.u32 %v37, 4294901760
    %v240 = vsub.f32 %v37, %v239
    %v241 = vand.u32 %v240, 4294901760
    %v242 = vsub.f32 %v240, %v241
    %v243 = vand.u32 %v242, 4294901760
    %244 = vmatpush1.msra.mxu0 %v243
    %245 = vmatprep.subr.mxu0 0.0
    %v246 = vand.u32 %v38, 4294901760
    %v247 = vsub.f32 %v38, %v246
    %v248 = vand.u32 %v247, 4294901760
    %v249 = vsub.f32 %v247, %v248
    %v250 = vand.u32 %v249, 4294901760
    %251 = vmatpush1.msra.mxu0 %v250
    %252 = vmatprep.subr.mxu0 0.0
    %253 = vmatpush1.msra.mxu0 0.0
    %254 = vmatprep.subr.mxu0 0.0
    %255 = vmatpush1.msra.mxu0 0.0
    %256 = vmatprep.subr.mxu0 0.0
    %257 = vmatpush1.msra.mxu0 0.0
    %258 = vmatprep.subr.mxu0 0.0
    %259 = vmatpush1.msra.mxu0 0.0
    %260 = vmatprep.subr.mxu0 0.0
    %261 = vmatpush1.msra.mxu0 0.0
    %262 = vmatprep.subr.mxu0 0.0
    %263 = vmatpush1.msra.mxu0 0.0
    %264 = vmatprep.subr.mxu0 0.0
    %265 = vmatpush1.msra.mxu0 0.0
    %266 = vmatprep.subr.mxu0 0.0
    %267 = vmatpush1.msra.mxu0 0.0
    %268 = vmatprep.subr.mxu0 0.0
    %269 = vmatpush1.msra.mxu0 0.0
    %270 = vmatprep.subr.mxu0 0.0
    %271 = vmatpush1.msra.mxu0 0.0
    %272 = vmatprep.subr.mxu0 0.0
    %273 = vmatpush1.msra.mxu0 0.0
    %274 = vmatprep.subr.mxu0 0.0
    %275 = vmatpush1.msra.mxu0 0.0
    %276 = vmatprep.subr.mxu0 0.0
    %277 = vmatpush1.msra.mxu0 0.0
    %278 = vmatprep.subr.mxu0 0.0
    %279 = vmatpush1.msra.mxu0 0.0
    %280 = vmatprep.subr.mxu0 0.0
    %281 = vmatpush1.msra.mxu0 0.0
    %282 = vmatprep.subr.mxu0 0.0
    %283 = vmatpush1.msra.mxu0 0.0
    %284 = vmatprep.mubr.f32.mxu0 0.0
    %v285 = vand.u32 %v21, 4294901760
    %286 = vmatmul.mubr.f32.gmra.mrb[0].mxu0 %v285
    %v287 = vpop.f32.mrb[0].mxu0
    %v288 = vadd.f32 %v127, %v287
    %v289 = vpop.f32.mrb[0].mxu0
    %290 = vmatprep.mubr.f32.mxu0 0.0
    %v291 = vand.u32 %v22, 4294901760
    %292 = vmatmul.mubr.f32.gmra.mrb[0].mxu0 %v291
    %v293 = vpop.f32.mrb[0].mxu0
    %v294 = vadd.f32 %v137, %v293
    %v295 = vpop.f32.mrb[0].mxu0
    %296 = vdwg.mxu0
    %297 = vmatprep.subr.mxu0 0.0
    %v298 = vand.u32 %v23, 4294901760
    %v299 = vsub.f32 %v23, %v298
    %300 = vmatpush1.msra.mxu0 %v299
    %301 = vmatprep.subr.mxu0 0.0
    %v302 = vand.u32 %v24, 4294901760
    %v303 = vsub.f32 %v24, %v302
    %304 = vmatpush1.msra.mxu0 %v303
    %305 = vmatprep.subr.mxu0 0.0
    %v306 = vand.u32 %v25, 4294901760
    %v307 = vsub.f32 %v25, %v306
    %308 = vmatpush1.msra.mxu0 %v307
    %309 = vmatprep.subr.mxu0 0.0
    %v310 = vand.u32 %v26, 4294901760
    %v311 = vsub.f32 %v26, %v310
    %312 = vmatpush1.msra.mxu0 %v311
    %313 = vmatprep.subr.mxu0 0.0
    %v314 = vand.u32 %v27, 4294901760
    %v315 = vsub.f32 %v27, %v314
    %316 = vmatpush1.msra.mxu0 %v315
    %317 = vmatprep.subr.mxu0 0.0
    %v318 = vand.u32 %v28, 4294901760
    %v319 = vsub.f32 %v28, %v318
    %320 = vmatpush1.msra.mxu0 %v319
    %321 = vmatprep.subr.mxu0 0.0
    %v322 = vand.u32 %v29, 4294901760
    %v323 = vsub.f32 %v29, %v322
    %324 = vmatpush1.msra.mxu0 %v323
    %325 = vmatprep.subr.mxu0 0.0
    %v326 = vand.u32 %v30, 4294901760
    %v327 = vsub.f32 %v30, %v326
    %328 = vmatpush1.msra.mxu0 %v327
    %329 = vmatprep.subr.mxu0 0.0
    %v330 = vand.u32 %v31, 4294901760
    %v331 = vsub.f32 %v31, %v330
    %332 = vmatpush1.msra.mxu0 %v331
    %333 = vmatprep.subr.mxu0 0.0
    %v334 = vand.u32 %v32, 4294901760
    %v335 = vsub.f32 %v32, %v334
    %336 = vmatpush1.msra.mxu0 %v335
    %337 = vmatprep.subr.mxu0 0.0
    %v338 = vand.u32 %v33, 4294901760
    %v339 = vsub.f32 %v33, %v338
    %340 = vmatpush1.msra.mxu0 %v339
    %341 = vmatprep.subr.mxu0 0.0
    %v342 = vand.u32 %v34, 4294901760
    %v343 = vsub.f32 %v34, %v342
    %344 = vmatpush1.msra.mxu0 %v343
    %345 = vmatprep.subr.mxu0 0.0
    %v346 = vand.u32 %v35, 4294901760
    %v347 = vsub.f32 %v35, %v346
    %348 = vmatpush1.msra.mxu0 %v347
    %349 = vmatprep.subr.mxu0 0.0
    %v350 = vand.u32 %v36, 4294901760
    %v351 = vsub.f32 %v36, %v350
    %352 = vmatpush1.msra.mxu0 %v351
    %353 = vmatprep.subr.mxu0 0.0
    %v354 = vand.u32 %v37, 4294901760
    %v355 = vsub.f32 %v37, %v354
    %356 = vmatpush1.msra.mxu0 %v355
    %357 = vmatprep.subr.mxu0 0.0
    %v358 = vand.u32 %v38, 4294901760
    %v359 = vsub.f32 %v38, %v358
    %360 = vmatpush1.msra.mxu0 %v359
    %361 = vmatprep.subr.mxu0 0.0
    %362 = vmatpush1.msra.mxu0 0.0
    %363 = vmatprep.subr.mxu0 0.0
    %364 = vmatpush1.msra.mxu0 0.0
    %365 = vmatprep.subr.mxu0 0.0
    %366 = vmatpush1.msra.mxu0 0.0
    %367 = vmatprep.subr.mxu0 0.0
    %368 = vmatpush1.msra.mxu0 0.0
    %369 = vmatprep.subr.mxu0 0.0
    %370 = vmatpush1.msra.mxu0 0.0
    %371 = vmatprep.subr.mxu0 0.0
    %372 = vmatpush1.msra.mxu0 0.0
    %373 = vmatprep.subr.mxu0 0.0
    %374 = vmatpush1.msra.mxu0 0.0
    %375 = vmatprep.subr.mxu0 0.0
    %376 = vmatpush1.msra.mxu0 0.0
    %377 = vmatprep.subr.mxu0 0.0
    %378 = vmatpush1.msra.mxu0 0.0
    %379 = vmatprep.subr.mxu0 0.0
    %380 = vmatpush1.msra.mxu0 0.0
    %381 = vmatprep.subr.mxu0 0.0
    %382 = vmatpush1.msra.mxu0 0.0
    %383 = vmatprep.subr.mxu0 0.0
    %384 = vmatpush1.msra.mxu0 0.0
    %385 = vmatprep.subr.mxu0 0.0
    %386 = vmatpush1.msra.mxu0 0.0
    %387 = vmatprep.subr.mxu0 0.0
    %388 = vmatpush1.msra.mxu0 0.0
    %389 = vmatprep.subr.mxu0 0.0
    %390 = vmatpush1.msra.mxu0 0.0
    %391 = vmatprep.subr.mxu0 0.0
    %392 = vmatpush1.msra.mxu0 0.0
    %393 = vmatprep.mubr.f32.mxu0 0.0
    %v394 = vand.u32 %v21, 4294901760
    %v395 = vsub.f32 %v21, %v394
    %396 = vmatmul.mubr.f32.gmra.mrb[0].mxu0 %v395
    %v397 = vpop.f32.mrb[0].mxu0
    %v398 = vadd.f32 %v288, %v397
    %v399 = vpop.f32.mrb[0].mxu0
    %400 = vmatprep.mubr.f32.mxu0 0.0
    %v401 = vand.u32 %v22, 4294901760
    %v402 = vsub.f32 %v22, %v401
    %403 = vmatmul.mubr.f32.gmra.mrb[0].mxu0 %v402
    %v404 = vpop.f32.mrb[0].mxu0
    %v405 = vadd.f32 %v294, %v404
    %v406 = vpop.f32.mrb[0].mxu0
    %407 = vdwg.mxu0
    %408 = vmatprep.subr.mxu0 0.0
    %v409 = vand.u32 %v23, 4294901760
    %410 = vmatpush1.msra.mxu0 %v409
    %411 = vmatprep.subr.mxu0 0.0
    %v412 = vand.u32 %v24, 4294901760
    %413 = vmatpush1.msra.mxu0 %v412
    %414 = vmatprep.subr.mxu0 0.0
    %v415 = vand.u32 %v25, 4294901760
    %416 = vmatpush1.msra.mxu0 %v415
    %417 = vmatprep.subr.mxu0 0.0
    %v418 = vand.u32 %v26, 4294901760
    %419 = vmatpush1.msra.mxu0 %v418
    %420 = vmatprep.subr.mxu0 0.0
    %v421 = vand.u32 %v27, 4294901760
    %422 = vmatpush1.msra.mxu0 %v421
    %423 = vmatprep.subr.mxu0 0.0
    %v424 = vand.u32 %v28, 4294901760
    %425 = vmatpush1.msra.mxu0 %v424
    %426 = vmatprep.subr.mxu0 0.0
    %v427 = vand.u32 %v29, 4294901760
    %428 = vmatpush1.msra.mxu0 %v427
    %429 = vmatprep.subr.mxu0 0.0
    %v430 = vand.u32 %v30, 4294901760
    %431 = vmatpush1.msra.mxu0 %v430
    %432 = vmatprep.subr.mxu0 0.0
    %v433 = vand.u32 %v31, 4294901760
    %434 = vmatpush1.msra.mxu0 %v433
    %435 = vmatprep.subr.mxu0 0.0
    %v436 = vand.u32 %v32, 4294901760
    %437 = vmatpush1.msra.mxu0 %v436
    %438 = vmatprep.subr.mxu0 0.0
    %v439 = vand.u32 %v33, 4294901760
    %440 = vmatpush1.msra.mxu0 %v439
    %441 = vmatprep.subr.mxu0 0.0
    %v442 = vand.u32 %v34, 4294901760
    %443 = vmatpush1.msra.mxu0 %v442
    %444 = vmatprep.subr.mxu0 0.0
    %v445 = vand.u32 %v35, 4294901760
    %446 = vmatpush1.msra.mxu0 %v445
    %447 = vmatprep.subr.mxu0 0.0
    %v448 = vand.u32 %v36, 4294901760
    %449 = vmatpush1.msra.mxu0 %v448
    %450 = vmatprep.subr.mxu0 0.0
    %v451 = vand.u32 %v37, 4294901760
    %452 = vmatpush1.msra.mxu0 %v451
    %453 = vmatprep.subr.mxu0 0.0
    %v454 = vand.u32 %v38, 4294901760
    %455 = vmatpush1.msra.mxu0 %v454
    %456 = vmatprep.subr.mxu0 0.0
    %457 = vmatpush1.msra.mxu0 0.0
    %458 = vmatprep.subr.mxu0 0.0
    %459 = vmatpush1.msra.mxu0 0.0
    %460 = vmatprep.subr.mxu0 0.0
    %461 = vmatpush1.msra.mxu0 0.0
    %462 = vmatprep.subr.mxu0 0.0
    %463 = vmatpush1.msra.mxu0 0.0
    %464 = vmatprep.subr.mxu0 0.0
    %465 = vmatpush1.msra.mxu0 0.0
    %466 = vmatprep.subr.mxu0 0.0
    %467 = vmatpush1.msra.mxu0 0.0
    %468 = vmatprep.subr.mxu0 0.0
    %469 = vmatpush1.msra.mxu0 0.0
    %470 = vmatprep.subr.mxu0 0.0
    %471 = vmatpush1.msra.mxu0 0.0
    %472 = vmatprep.subr.mxu0 0.0
    %473 = vmatpush1.msra.mxu0 0.0
    %474 = vmatprep.subr.mxu0 0.0
    %475 = vmatpush1.msra.mxu0 0.0
    %476 = vmatprep.subr.mxu0 0.0
    %477 = vmatpush1.msra.mxu0 0.0
    %478 = vmatprep.subr.mxu0 0.0
    %479 = vmatpush1.msra.mxu0 0.0
    %480 = vmatprep.subr.mxu0 0.0
    %481 = vmatpush1.msra.mxu0 0.0
    %482 = vmatprep.subr.mxu0 0.0
    %483 = vmatpush1.msra.mxu0 0.0
    %484 = vmatprep.subr.mxu0 0.0
    %485 = vmatpush1.msra.mxu0 0.0
    %486 = vmatprep.subr.mxu0 0.0
    %487 = vmatpush1.msra.mxu0 0.0
    %488 = vmatprep.mubr.f32.mxu0 0.0
    %v489 = vand.u32 %v21, 4294901760
    %v490 = vsub.f32 %v21, %v489
    %v491 = vand.u32 %v490, 4294901760
    %492 = vmatmul.mubr.f32.gmra.mrb[0].mxu0 %v491
    %v493 = vpop.f32.mrb[0].mxu0
    %v494 = vadd.f32 %v398, %v493
    %v495 = vpop.f32.mrb[0].mxu0
    %496 = vmatprep.mubr.f32.mxu0 0.0
    %v497 = vand.u32 %v22, 4294901760
    %v498 = vsub.f32 %v22, %v497
    %v499 = vand.u32 %v498, 4294901760
    %500 = vmatmul.mubr.f32.gmra.mrb[0].mxu0 %v499
    %v501 = vpop.f32.mrb[0].mxu0
    %v502 = vadd.f32 %v405, %v501
    %v503 = vpop.f32.mrb[0].mxu0
    %504 = vdwg.mxu0
    %505 = vmatprep.subr.mxu0 0.0
    %v506 = vand.u32 %v23, 4294901760
    %v507 = vsub.f32 %v23, %v506
    %v508 = vand.u32 %v507, 4294901760
    %509 = vmatpush1.msra.mxu0 %v508
    %510 = vmatprep.subr.mxu0 0.0
    %v511 = vand.u32 %v24, 4294901760
    %v512 = vsub.f32 %v24, %v511
    %v513 = vand.u32 %v512, 4294901760
    %514 = vmatpush1.msra.mxu0 %v513
    %515 = vmatprep.subr.mxu0 0.0
    %v516 = vand.u32 %v25, 4294901760
    %v517 = vsub.f32 %v25, %v516
    %v518 = vand.u32 %v517, 4294901760
    %519 = vmatpush1.msra.mxu0 %v518
    %520 = vmatprep.subr.mxu0 0.0
    %v521 = vand.u32 %v26, 4294901760
    %v522 = vsub.f32 %v26, %v521
    %v523 = vand.u32 %v522, 4294901760
    %524 = vmatpush1.msra.mxu0 %v523
    %525 = vmatprep.subr.mxu0 0.0
    %v526 = vand.u32 %v27, 4294901760
    %v527 = vsub.f32 %v27, %v526
    %v528 = vand.u32 %v527, 4294901760
    %529 = vmatpush1.msra.mxu0 %v528
    %530 = vmatprep.subr.mxu0 0.0
    %v531 = vand.u32 %v28, 4294901760
    %v532 = vsub.f32 %v28, %v531
    %v533 = vand.u32 %v532, 4294901760
    %534 = vmatpush1.msra.mxu0 %v533
    %535 = vmatprep.subr.mxu0 0.0
    %v536 = vand.u32 %v29, 4294901760
    %v537 = vsub.f32 %v29, %v536
    %v538 = vand.u32 %v537, 4294901760
    %539 = vmatpush1.msra.mxu0 %v538
    %540 = vmatprep.subr.mxu0 0.0
    %v541 = vand.u32 %v30, 4294901760
    %v542 = vsub.f32 %v30, %v541
    %v543 = vand.u32 %v542, 4294901760
    %544 = vmatpush1.msra.mxu0 %v543
    %545 = vmatprep.subr.mxu0 0.0
    %v546 = vand.u32 %v31, 4294901760
    %v547 = vsub.f32 %v31, %v546
    %v548 = vand.u32 %v547, 4294901760
    %549 = vmatpush1.msra.mxu0 %v548
    %550 = vmatprep.subr.mxu0 0.0
    %v551 = vand.u32 %v32, 4294901760
    %v552 = vsub.f32 %v32, %v551
    %v553 = vand.u32 %v552, 4294901760
    %554 = vmatpush1.msra.mxu0 %v553
    %555 = vmatprep.subr.mxu0 0.0
    %v556 = vand.u32 %v33, 4294901760
    %v557 = vsub.f32 %v33, %v556
    %v558 = vand.u32 %v557, 4294901760
    %559 = vmatpush1.msra.mxu0 %v558
    %560 = vmatprep.subr.mxu0 0.0
    %v561 = vand.u32 %v34, 4294901760
    %v562 = vsub.f32 %v34, %v561
    %v563 = vand.u32 %v562, 4294901760
    %564 = vmatpush1.msra.mxu0 %v563
    %565 = vmatprep.subr.mxu0 0.0
    %v566 = vand.u32 %v35, 4294901760
    %v567 = vsub.f32 %v35, %v566
    %v568 = vand.u32 %v567, 4294901760
    %569 = vmatpush1.msra.mxu0 %v568
    %570 = vmatprep.subr.mxu0 0.0
    %v571 = vand.u32 %v36, 4294901760
    %v572 = vsub.f32 %v36, %v571
    %v573 = vand.u32 %v572, 4294901760
    %574 = vmatpush1.msra.mxu0 %v573
    %575 = vmatprep.subr.mxu0 0.0
    %v576 = vand.u32 %v37, 4294901760
    %v577 = vsub.f32 %v37, %v576
    %v578 = vand.u32 %v577, 4294901760
    %579 = vmatpush1.msra.mxu0 %v578
    %580 = vmatprep.subr.mxu0 0.0
    %v581 = vand.u32 %v38, 4294901760
    %v582 = vsub.f32 %v38, %v581
    %v583 = vand.u32 %v582, 4294901760
    %584 = vmatpush1.msra.mxu0 %v583
    %585 = vmatprep.subr.mxu0 0.0
    %586 = vmatpush1.msra.mxu0 0.0
    %587 = vmatprep.subr.mxu0 0.0
    %588 = vmatpush1.msra.mxu0 0.0
    %589 = vmatprep.subr.mxu0 0.0
    %590 = vmatpush1.msra.mxu0 0.0
    %591 = vmatprep.subr.mxu0 0.0
    %592 = vmatpush1.msra.mxu0 0.0
    %593 = vmatprep.subr.mxu0 0.0
    %594 = vmatpush1.msra.mxu0 0.0
    %595 = vmatprep.subr.mxu0 0.0
    %596 = vmatpush1.msra.mxu0 0.0
    %597 = vmatprep.subr.mxu0 0.0
    %598 = vmatpush1.msra.mxu0 0.0
    %599 = vmatprep.subr.mxu0 0.0
    %600 = vmatpush1.msra.mxu0 0.0
    %601 = vmatprep.subr.mxu0 0.0
    %602 = vmatpush1.msra.mxu0 0.0
    %603 = vmatprep.subr.mxu0 0.0
    %604 = vmatpush1.msra.mxu0 0.0
    %605 = vmatprep.subr.mxu0 0.0
    %606 = vmatpush1.msra.mxu0 0.0
    %607 = vmatprep.subr.mxu0 0.0
    %608 = vmatpush1.msra.mxu0 0.0
    %609 = vmatprep.subr.mxu0 0.0
    %610 = vmatpush1.msra.mxu0 0.0
    %611 = vmatprep.subr.mxu0 0.0
    %612 = vmatpush1.msra.mxu0 0.0
    %613 = vmatprep.subr.mxu0 0.0
    %614 = vmatpush1.msra.mxu0 0.0
    %615 = vmatprep.subr.mxu0 0.0
    %616 = vmatpush1.msra.mxu0 0.0
    %617 = vmatprep.mubr.f32.mxu0 0.0
    %v618 = vand.u32 %v21, 4294901760
    %619 = vmatmul.mubr.f32.gmra.mrb[0].mxu0 %v618
    %v620 = vpop.f32.mrb[0].mxu0
    %v621 = vadd.f32 %v494, %v620
    %v622 = vpop.f32.mrb[0].mxu0
    %623 = vmatprep.mubr.f32.mxu0 0.0
    %v624 = vand.u32 %v22, 4294901760
    %625 = vmatmul.mubr.f32.gmra.mrb[0].mxu0 %v624
    %v626 = vpop.f32.mrb[0].mxu0
    %v627 = vadd.f32 %v502, %v626
    %v628 = vpop.f32.mrb[0].mxu0
    %629 = vdwg.mxu0
    %630 = vmatprep.subr.mxu0 0.0
    %v631 = vand.u32 %v23, 4294901760
    %632 = vmatpush1.msra.mxu0 %v631
    %633 = vmatprep.subr.mxu0 0.0
    %v634 = vand.u32 %v24, 4294901760
    %635 = vmatpush1.msra.mxu0 %v634
    %636 = vmatprep.subr.mxu0 0.0
    %v637 = vand.u32 %v25, 4294901760
    %638 = vmatpush1.msra.mxu0 %v637
    %639 = vmatprep.subr.mxu0 0.0
    %v640 = vand.u32 %v26, 4294901760
    %641 = vmatpush1.msra.mxu0 %v640
    %642 = vmatprep.subr.mxu0 0.0
    %v643 = vand.u32 %v27, 4294901760
    %644 = vmatpush1.msra.mxu0 %v643
    %645 = vmatprep.subr.mxu0 0.0
    %v646 = vand.u32 %v28, 4294901760
    %647 = vmatpush1.msra.mxu0 %v646
    %648 = vmatprep.subr.mxu0 0.0
    %v649 = vand.u32 %v29, 4294901760
    %650 = vmatpush1.msra.mxu0 %v649
    %651 = vmatprep.subr.mxu0 0.0
    %v652 = vand.u32 %v30, 4294901760
    %653 = vmatpush1.msra.mxu0 %v652
    %654 = vmatprep.subr.mxu0 0.0
    %v655 = vand.u32 %v31, 4294901760
    %656 = vmatpush1.msra.mxu0 %v655
    %657 = vmatprep.subr.mxu0 0.0
    %v658 = vand.u32 %v32, 4294901760
    %659 = vmatpush1.msra.mxu0 %v658
    %660 = vmatprep.subr.mxu0 0.0
    %v661 = vand.u32 %v33, 4294901760
    %662 = vmatpush1.msra.mxu0 %v661
    %663 = vmatprep.subr.mxu0 0.0
    %v664 = vand.u32 %v34, 4294901760
    %665 = vmatpush1.msra.mxu0 %v664
    %666 = vmatprep.subr.mxu0 0.0
    %v667 = vand.u32 %v35, 4294901760
    %668 = vmatpush1.msra.mxu0 %v667
    %669 = vmatprep.subr.mxu0 0.0
    %v670 = vand.u32 %v36, 4294901760
    %671 = vmatpush1.msra.mxu0 %v670
    %672 = vmatprep.subr.mxu0 0.0
    %v673 = vand.u32 %v37, 4294901760
    %674 = vmatpush1.msra.mxu0 %v673
    %675 = vmatprep.subr.mxu0 0.0
    %v676 = vand.u32 %v38, 4294901760
    %677 = vmatpush1.msra.mxu0 %v676
    %678 = vmatprep.subr.mxu0 0.0
    %679 = vmatpush1.msra.mxu0 0.0
    %680 = vmatprep.subr.mxu0 0.0
    %681 = vmatpush1.msra.mxu0 0.0
    %682 = vmatprep.subr.mxu0 0.0
    %683 = vmatpush1.msra.mxu0 0.0
    %684 = vmatprep.subr.mxu0 0.0
    %685 = vmatpush1.msra.mxu0 0.0
    %686 = vmatprep.subr.mxu0 0.0
    %687 = vmatpush1.msra.mxu0 0.0
    %688 = vmatprep.subr.mxu0 0.0
    %689 = vmatpush1.msra.mxu0 0.0
    %690 = vmatprep.subr.mxu0 0.0
    %691 = vmatpush1.msra.mxu0 0.0
    %692 = vmatprep.subr.mxu0 0.0
    %693 = vmatpush1.msra.mxu0 0.0
    %694 = vmatprep.subr.mxu0 0.0
    %695 = vmatpush1.msra.mxu0 0.0
    %696 = vmatprep.subr.mxu0 0.0
    %697 = vmatpush1.msra.mxu0 0.0
    %698 = vmatprep.subr.mxu0 0.0
    %699 = vmatpush1.msra.mxu0 0.0
    %700 = vmatprep.subr.mxu0 0.0
    %701 = vmatpush1.msra.mxu0 0.0
    %702 = vmatprep.subr.mxu0 0.0
    %703 = vmatpush1.msra.mxu0 0.0
    %704 = vmatprep.subr.mxu0 0.0
    %705 = vmatpush1.msra.mxu0 0.0
    %706 = vmatprep.subr.mxu0 0.0
    %707 = vmatpush1.msra.mxu0 0.0
    %708 = vmatprep.subr.mxu0 0.0
    %709 = vmatpush1.msra.mxu0 0.0
    %710 = vmatprep.mubr.f32.mxu0 0.0
    %v711 = vand.u32 %v21, 4294901760
    %712 = vmatmul.mubr.f32.gmra.mrb[0].mxu0 %v711
    %v713 = vpop.f32.mrb[0].mxu0
    %v714 = vadd.f32 %v621, %v713
    %v715 = vpop.f32.mrb[0].mxu0
    %716 = vmatprep.mubr.f32.mxu0 0.0
    %v717 = vand.u32 %v22, 4294901760
    %718 = vmatmul.mubr.f32.gmra.mrb[0].mxu0 %v717
    %v719 = vpop.f32.mrb[0].mxu0
    %v720 = vadd.f32 %v627, %v719
    %v721 = vpop.f32.mrb[0].mxu0
    %722 = vdwg.mxu0
    %v723 = vmul.f32 %v21, %v21
    %v724 = vmul.f32 %v22, %v22
    %s725 = scalar_lea.vmem %s1, 128
    %v726 = vld [vmem:[%s725] sm:$0xff]
    %v727 = vld [vmem:[%s725 + $0x8] sm:$0xff]
    %v728 = vld [vmem:[%s725 + $0x10] sm:$0xff]
    %v729 = vld [vmem:[%s725 + $0x18] sm:$0xff]
    %v730 = vld [vmem:[%s725 + $0x20] sm:$0xff]
    %v731 = vld [vmem:[%s725 + $0x28] sm:$0xff]
    %v732 = vld [vmem:[%s725 + $0x30] sm:$0xff]
    %v733 = vld [vmem:[%s725 + $0x38] sm:$0xff]
    %v734 = vld [vmem:[%s725 + $0x40] sm:$0xff]
    %v735 = vld [vmem:[%s725 + $0x48] sm:$0xff]
    %v736 = vld [vmem:[%s725 + $0x50] sm:$0xff]
    %v737 = vld [vmem:[%s725 + $0x58] sm:$0xff]
    %v738 = vld [vmem:[%s725 + $0x60] sm:$0xff]
    %v739 = vld [vmem:[%s725 + $0x68] sm:$0xff]
    %v740 = vld [vmem:[%s725 + $0x70] sm:$0xff]
    %v741 = vld [vmem:[%s725 + $0x78] sm:$0xff]
    %742 = vmatprep.subr.mxu0 0.0
    %v743 = vand.u32 %v726, 4294901760
    %744 = vmatpush1.msra.mxu0 %v743
    %745 = vmatprep.subr.mxu0 0.0
    %v746 = vand.u32 %v727, 4294901760
    %747 = vmatpush1.msra.mxu0 %v746
    %748 = vmatprep.subr.mxu0 0.0
    %v749 = vand.u32 %v728, 4294901760
    %750 = vmatpush1.msra.mxu0 %v749
    %751 = vmatprep.subr.mxu0 0.0
    %v752 = vand.u32 %v729, 4294901760
    %753 = vmatpush1.msra.mxu0 %v752
    %754 = vmatprep.subr.mxu0 0.0
    %v755 = vand.u32 %v730, 4294901760
    %756 = vmatpush1.msra.mxu0 %v755
    %757 = vmatprep.subr.mxu0 0.0
    %v758 = vand.u32 %v731, 4294901760
    %759 = vmatpush1.msra.mxu0 %v758
    %760 = vmatprep.subr.mxu0 0.0
    %v761 = vand.u32 %v732, 4294901760
    %762 = vmatpush1.msra.mxu0 %v761
    %763 = vmatprep.subr.mxu0 0.0
    %v764 = vand.u32 %v733, 4294901760
    %765 = vmatpush1.msra.mxu0 %v764
    %766 = vmatprep.subr.mxu0 0.0
    %v767 = vand.u32 %v734, 4294901760
    %768 = vmatpush1.msra.mxu0 %v767
    %769 = vmatprep.subr.mxu0 0.0
    %v770 = vand.u32 %v735, 4294901760
    %771 = vmatpush1.msra.mxu0 %v770
    %772 = vmatprep.subr.mxu0 0.0
    %v773 = vand.u32 %v736, 4294901760
    %774 = vmatpush1.msra.mxu0 %v773
    %775 = vmatprep.subr.mxu0 0.0
    %v776 = vand.u32 %v737, 4294901760
    %777 = vmatpush1.msra.mxu0 %v776
    %778 = vmatprep.subr.mxu0 0.0
    %v779 = vand.u32 %v738, 4294901760
    %780 = vmatpush1.msra.mxu0 %v779
    %781 = vmatprep.subr.mxu0 0.0
    %v782 = vand.u32 %v739, 4294901760
    %783 = vmatpush1.msra.mxu0 %v782
    %784 = vmatprep.subr.mxu0 0.0
    %v785 = vand.u32 %v740, 4294901760
    %786 = vmatpush1.msra.mxu0 %v785
    %787 = vmatprep.subr.mxu0 0.0
    %v788 = vand.u32 %v741, 4294901760
    %789 = vmatpush1.msra.mxu0 %v788
    %790 = vmatprep.subr.mxu0 0.0
    %791 = vmatpush1.msra.mxu0 0.0
    %792 = vmatprep.subr.mxu0 0.0
    %793 = vmatpush1.msra.mxu0 0.0
    %794 = vmatprep.subr.mxu0 0.0
    %795 = vmatpush1.msra.mxu0 0.0
    %796 = vmatprep.subr.mxu0 0.0
    %797 = vmatpush1.msra.mxu0 0.0
    %798 = vmatprep.subr.mxu0 0.0
    %799 = vmatpush1.msra.mxu0 0.0
    %800 = vmatprep.subr.mxu0 0.0
    %801 = vmatpush1.msra.mxu0 0.0
    %802 = vmatprep.subr.mxu0 0.0
    %803 = vmatpush1.msra.mxu0 0.0
    %804 = vmatprep.subr.mxu0 0.0
    %805 = vmatpush1.msra.mxu0 0.0
    %806 = vmatprep.subr.mxu0 0.0
    %807 = vmatpush1.msra.mxu0 0.0
    %808 = vmatprep.subr.mxu0 0.0
    %809 = vmatpush1.msra.mxu0 0.0
    %810 = vmatprep.subr.mxu0 0.0
    %811 = vmatpush1.msra.mxu0 0.0
    %812 = vmatprep.subr.mxu0 0.0
    %813 = vmatpush1.msra.mxu0 0.0
    %814 = vmatprep.subr.mxu0 0.0
    %815 = vmatpush1.msra.mxu0 0.0
    %816 = vmatprep.subr.mxu0 0.0
    %817 = vmatpush1.msra.mxu0 0.0
    %818 = vmatprep.subr.mxu0 0.0
    %819 = vmatpush1.msra.mxu0 0.0
    %820 = vmatprep.subr.mxu0 0.0
    %821 = vmatpush1.msra.mxu0 0.0
    %822 = vmatprep.mubr.f32.mxu0 0.0
    %v823 = vand.u32 %v723, 4294901760
    %v824 = vsub.f32 %v723, %v823
    %v825 = vand.u32 %v824, 4294901760
    %v826 = vsub.f32 %v824, %v825
    %v827 = vand.u32 %v826, 4294901760
    %828 = vmatmul.mubr.f32.gmra.mrb[0].mxu0 %v827
    %v829 = vpop.f32.mrb[0].mxu0
    %v830 = vadd.f32 0.0, %v829
    %v831 = vpop.f32.mrb[0].mxu0
    %832 = vmatprep.mubr.f32.mxu0 0.0
    %v833 = vand.u32 %v724, 4294901760
    %v834 = vsub.f32 %v724, %v833
    %v835 = vand.u32 %v834, 4294901760
    %v836 = vsub.f32 %v834, %v835
    %v837 = vand.u32 %v836, 4294901760
    %838 = vmatmul.mubr.f32.gmra.mrb[0].mxu0 %v837
    %v839 = vpop.f32.mrb[0].mxu0
    %v840 = vadd.f32 0.0, %v839
    %v841 = vpop.f32.mrb[0].mxu0
    %842 = vdwg.mxu0
    %843 = vmatprep.subr.mxu0 0.0
    %v844 = vand.u32 %v726, 4294901760
    %v845 = vsub.f32 %v726, %v844
    %v846 = vand.u32 %v845, 4294901760
    %v847 = vsub.f32 %v845, %v846
    %v848 = vand.u32 %v847, 4294901760
    %849 = vmatpush1.msra.mxu0 %v848
    %850 = vmatprep.subr.mxu0 0.0
    %v851 = vand.u32 %v727, 4294901760
    %v852 = vsub.f32 %v727, %v851
    %v853 = vand.u32 %v852, 4294901760
    %v854 = vsub.f32 %v852, %v853
    %v855 = vand.u32 %v854, 4294901760
    %856 = vmatpush1.msra.mxu0 %v855
    %857 = vmatprep.subr.mxu0 0.0
    %v858 = vand.u32 %v728, 4294901760
    %v859 = vsub.f32 %v728, %v858
    %v860 = vand.u32 %v859, 4294901760
    %v861 = vsub.f32 %v859, %v860
    %v862 = vand.u32 %v861, 4294901760
    %863 = vmatpush1.msra.mxu0 %v862
    %864 = vmatprep.subr.mxu0 0.0
    %v865 = vand.u32 %v729, 4294901760
    %v866 = vsub.f32 %v729, %v865
    %v867 = vand.u32 %v866, 4294901760
    %v868 = vsub.f32 %v866, %v867
    %v869 = vand.u32 %v868, 4294901760
    %870 = vmatpush1.msra.mxu0 %v869
    %871 = vmatprep.subr.mxu0 0.0
    %v872 = vand.u32 %v730, 4294901760
    %v873 = vsub.f32 %v730, %v872
    %v874 = vand.u32 %v873, 4294901760
    %v875 = vsub.f32 %v873, %v874
    %v876 = vand.u32 %v875, 4294901760
    %877 = vmatpush1.msra.mxu0 %v876
    %878 = vmatprep.subr.mxu0 0.0
    %v879 = vand.u32 %v731, 4294901760
    %v880 = vsub.f32 %v731, %v879
    %v881 = vand.u32 %v880, 4294901760
    %v882 = vsub.f32 %v880, %v881
    %v883 = vand.u32 %v882, 4294901760
    %884 = vmatpush1.msra.mxu0 %v883
    %885 = vmatprep.subr.mxu0 0.0
    %v886 = vand.u32 %v732, 4294901760
    %v887 = vsub.f32 %v732, %v886
    %v888 = vand.u32 %v887, 4294901760
    %v889 = vsub.f32 %v887, %v888
    %v890 = vand.u32 %v889, 4294901760
    %891 = vmatpush1.msra.mxu0 %v890
    %892 = vmatprep.subr.mxu0 0.0
    %v893 = vand.u32 %v733, 4294901760
    %v894 = vsub.f32 %v733, %v893
    %v895 = vand.u32 %v894, 4294901760
    %v896 = vsub.f32 %v894, %v895
    %v897 = vand.u32 %v896, 4294901760
    %898 = vmatpush1.msra.mxu0 %v897
    %899 = vmatprep.subr.mxu0 0.0
    %v900 = vand.u32 %v734, 4294901760
    %v901 = vsub.f32 %v734, %v900
    %v902 = vand.u32 %v901, 4294901760
    %v903 = vsub.f32 %v901, %v902
    %v904 = vand.u32 %v903, 4294901760
    %905 = vmatpush1.msra.mxu0 %v904
    %906 = vmatprep.subr.mxu0 0.0
    %v907 = vand.u32 %v735, 4294901760
    %v908 = vsub.f32 %v735, %v907
    %v909 = vand.u32 %v908, 4294901760
    %v910 = vsub.f32 %v908, %v909
    %v911 = vand.u32 %v910, 4294901760
    %912 = vmatpush1.msra.mxu0 %v911
    %913 = vmatprep.subr.mxu0 0.0
    %v914 = vand.u32 %v736, 4294901760
    %v915 = vsub.f32 %v736, %v914
    %v916 = vand.u32 %v915, 4294901760
    %v917 = vsub.f32 %v915, %v916
    %v918 = vand.u32 %v917, 4294901760
    %919 = vmatpush1.msra.mxu0 %v918
    %920 = vmatprep.subr.mxu0 0.0
    %v921 = vand.u32 %v737, 4294901760
    %v922 = vsub.f32 %v737, %v921
    %v923 = vand.u32 %v922, 4294901760
    %v924 = vsub.f32 %v922, %v923
    %v925 = vand.u32 %v924, 4294901760
    %926 = vmatpush1.msra.mxu0 %v925
    %927 = vmatprep.subr.mxu0 0.0
    %v928 = vand.u32 %v738, 4294901760
    %v929 = vsub.f32 %v738, %v928
    %v930 = vand.u32 %v929, 4294901760
    %v931 = vsub.f32 %v929, %v930
    %v932 = vand.u32 %v931, 4294901760
    %933 = vmatpush1.msra.mxu0 %v932
    %934 = vmatprep.subr.mxu0 0.0
    %v935 = vand.u32 %v739, 4294901760
    %v936 = vsub.f32 %v739, %v935
    %v937 = vand.u32 %v936, 4294901760
    %v938 = vsub.f32 %v936, %v937
    %v939 = vand.u32 %v938, 4294901760
    %940 = vmatpush1.msra.mxu0 %v939
    %941 = vmatprep.subr.mxu0 0.0
    %v942 = vand.u32 %v740, 4294901760
    %v943 = vsub.f32 %v740, %v942
    %v944 = vand.u32 %v943, 4294901760
    %v945 = vsub.f32 %v943, %v944
    %v946 = vand.u32 %v945, 4294901760
    %947 = vmatpush1.msra.mxu0 %v946
    %948 = vmatprep.subr.mxu0 0.0
    %v949 = vand.u32 %v741, 4294901760
    %v950 = vsub.f32 %v741, %v949
    %v951 = vand.u32 %v950, 4294901760
    %v952 = vsub.f32 %v950, %v951
    %v953 = vand.u32 %v952, 4294901760
    %954 = vmatpush1.msra.mxu0 %v953
    %955 = vmatprep.subr.mxu0 0.0
    %956 = vmatpush1.msra.mxu0 0.0
    %957 = vmatprep.subr.mxu0 0.0
    %958 = vmatpush1.msra.mxu0 0.0
    %959 = vmatprep.subr.mxu0 0.0
    %960 = vmatpush1.msra.mxu0 0.0
    %961 = vmatprep.subr.mxu0 0.0
    %962 = vmatpush1.msra.mxu0 0.0
    %963 = vmatprep.subr.mxu0 0.0
    %964 = vmatpush1.msra.mxu0 0.0
    %965 = vmatprep.subr.mxu0 0.0
    %966 = vmatpush1.msra.mxu0 0.0
    %967 = vmatprep.subr.mxu0 0.0
    %968 = vmatpush1.msra.mxu0 0.0
    %969 = vmatprep.subr.mxu0 0.0
    %970 = vmatpush1.msra.mxu0 0.0
    %971 = vmatprep.subr.mxu0 0.0
    %972 = vmatpush1.msra.mxu0 0.0
    %973 = vmatprep.subr.mxu0 0.0
    %974 = vmatpush1.msra.mxu0 0.0
    %975 = vmatprep.subr.mxu0 0.0
    %976 = vmatpush1.msra.mxu0 0.0
    %977 = vmatprep.subr.mxu0 0.0
    %978 = vmatpush1.msra.mxu0 0.0
    %979 = vmatprep.subr.mxu0 0.0
    %980 = vmatpush1.msra.mxu0 0.0
    %981 = vmatprep.subr.mxu0 0.0
    %982 = vmatpush1.msra.mxu0 0.0
    %983 = vmatprep.subr.mxu0 0.0
    %984 = vmatpush1.msra.mxu0 0.0
    %985 = vmatprep.subr.mxu0 0.0
    %986 = vmatpush1.msra.mxu0 0.0
    %987 = vmatprep.mubr.f32.mxu0 0.0
    %v988 = vand.u32 %v723, 4294901760
    %989 = vmatmul.mubr.f32.gmra.mrb[0].mxu0 %v988
    %v990 = vpop.f32.mrb[0].mxu0
    %v991 = vadd.f32 %v830, %v990
    %v992 = vpop.f32.mrb[0].mxu0
    %993 = vmatprep.mubr.f32.mxu0 0.0
    %v994 = vand.u32 %v724, 4294901760
    %995 = vmatmul.mubr.f32.gmra.mrb[0].mxu0 %v994
    %v996 = vpop.f32.mrb[0].mxu0
    %v997 = vadd.f32 %v840, %v996
    %v998 = vpop.f32.mrb[0].mxu0
    %999 = vdwg.mxu0
    %1000 = vmatprep.subr.mxu0 0.0
    %v1001 = vand.u32 %v726, 4294901760
    %v1002 = vsub.f32 %v726, %v1001
    %1003 = vmatpush1.msra.mxu0 %v1002
    %1004 = vmatprep.subr.mxu0 0.0
    %v1005 = vand.u32 %v727, 4294901760
    %v1006 = vsub.f32 %v727, %v1005
    %1007 = vmatpush1.msra.mxu0 %v1006
    %1008 = vmatprep.subr.mxu0 0.0
    %v1009 = vand.u32 %v728, 4294901760
    %v1010 = vsub.f32 %v728, %v1009
    %1011 = vmatpush1.msra.mxu0 %v1010
    %1012 = vmatprep.subr.mxu0 0.0
    %v1013 = vand.u32 %v729, 4294901760
    %v1014 = vsub.f32 %v729, %v1013
    %1015 = vmatpush1.msra.mxu0 %v1014
    %1016 = vmatprep.subr.mxu0 0.0
    %v1017 = vand.u32 %v730, 4294901760
    %v1018 = vsub.f32 %v730, %v1017
    %1019 = vmatpush1.msra.mxu0 %v1018
    %1020 = vmatprep.subr.mxu0 0.0
    %v1021 = vand.u32 %v731, 4294901760
    %v1022 = vsub.f32 %v731, %v1021
    %1023 = vmatpush1.msra.mxu0 %v1022
    %1024 = vmatprep.subr.mxu0 0.0
    %v1025 = vand.u32 %v732, 4294901760
    %v1026 = vsub.f32 %v732, %v1025
    %1027 = vmatpush1.msra.mxu0 %v1026
    %1028 = vmatprep.subr.mxu0 0.0
    %v1029 = vand.u32 %v733, 4294901760
    %v1030 = vsub.f32 %v733, %v1029
    %1031 = vmatpush1.msra.mxu0 %v1030
    %1032 = vmatprep.subr.mxu0 0.0
    %v1033 = vand.u32 %v734, 4294901760
    %v1034 = vsub.f32 %v734, %v1033
    %1035 = vmatpush1.msra.mxu0 %v1034
    %1036 = vmatprep.subr.mxu0 0.0
    %v1037 = vand.u32 %v735, 4294901760
    %v1038 = vsub.f32 %v735, %v1037
    %1039 = vmatpush1.msra.mxu0 %v1038
    %1040 = vmatprep.subr.mxu0 0.0
    %v1041 = vand.u32 %v736, 4294901760
    %v1042 = vsub.f32 %v736, %v1041
    %1043 = vmatpush1.msra.mxu0 %v1042
    %1044 = vmatprep.subr.mxu0 0.0
    %v1045 = vand.u32 %v737, 4294901760
    %v1046 = vsub.f32 %v737, %v1045
    %1047 = vmatpush1.msra.mxu0 %v1046
    %1048 = vmatprep.subr.mxu0 0.0
    %v1049 = vand.u32 %v738, 4294901760
    %v1050 = vsub.f32 %v738, %v1049
    %1051 = vmatpush1.msra.mxu0 %v1050
    %1052 = vmatprep.subr.mxu0 0.0
    %v1053 = vand.u32 %v739, 4294901760
    %v1054 = vsub.f32 %v739, %v1053
    %1055 = vmatpush1.msra.mxu0 %v1054
    %1056 = vmatprep.subr.mxu0 0.0
    %v1057 = vand.u32 %v740, 4294901760
    %v1058 = vsub.f32 %v740, %v1057
    %1059 = vmatpush1.msra.mxu0 %v1058
    %1060 = vmatprep.subr.mxu0 0.0
    %v1061 = vand.u32 %v741, 4294901760
    %v1062 = vsub.f32 %v741, %v1061
    %1063 = vmatpush1.msra.mxu0 %v1062
    %1064 = vmatprep.subr.mxu0 0.0
    %1065 = vmatpush1.msra.mxu0 0.0
    %1066 = vmatprep.subr.mxu0 0.0
    %1067 = vmatpush1.msra.mxu0 0.0
    %1068 = vmatprep.subr.mxu0 0.0
    %1069 = vmatpush1.msra.mxu0 0.0
    %1070 = vmatprep.subr.mxu0 0.0
    %1071 = vmatpush1.msra.mxu0 0.0
    %1072 = vmatprep.subr.mxu0 0.0
    %1073 = vmatpush1.msra.mxu0 0.0
    %1074 = vmatprep.subr.mxu0 0.0
    %1075 = vmatpush1.msra.mxu0 0.0
    %1076 = vmatprep.subr.mxu0 0.0
    %1077 = vmatpush1.msra.mxu0 0.0
    %1078 = vmatprep.subr.mxu0 0.0
    %1079 = vmatpush1.msra.mxu0 0.0
    %1080 = vmatprep.subr.mxu0 0.0
    %1081 = vmatpush1.msra.mxu0 0.0
    %1082 = vmatprep.subr.mxu0 0.0
    %1083 = vmatpush1.msra.mxu0 0.0
    %1084 = vmatprep.subr.mxu0 0.0
    %1085 = vmatpush1.msra.mxu0 0.0
    %1086 = vmatprep.subr.mxu0 0.0
    %1087 = vmatpush1.msra.mxu0 0.0
    %1088 = vmatprep.subr.mxu0 0.0
    %1089 = vmatpush1.msra.mxu0 0.0
    %1090 = vmatprep.subr.mxu0 0.0
    %1091 = vmatpush1.msra.mxu0 0.0
    %1092 = vmatprep.subr.mxu0 0.0
    %1093 = vmatpush1.msra.mxu0 0.0
    %1094 = vmatprep.subr.mxu0 0.0
    %1095 = vmatpush1.msra.mxu0 0.0
    %1096 = vmatprep.mubr.f32.mxu0 0.0
    %v1097 = vand.u32 %v723, 4294901760
    %v1098 = vsub.f32 %v723, %v1097
    %1099 = vmatmul.mubr.f32.gmra.mrb[0].mxu0 %v1098
    %v1100 = vpop.f32.mrb[0].mxu0
    %v1101 = vadd.f32 %v991, %v1100
    %v1102 = vpop.f32.mrb[0].mxu0
    %1103 = vmatprep.mubr.f32.mxu0 0.0
    %v1104 = vand.u32 %v724, 4294901760
    %v1105 = vsub.f32 %v724, %v1104
    %1106 = vmatmul.mubr.f32.gmra.mrb[0].mxu0 %v1105
    %v1107 = vpop.f32.mrb[0].mxu0
    %v1108 = vadd.f32 %v997, %v1107
    %v1109 = vpop.f32.mrb[0].mxu0
    %1110 = vdwg.mxu0
    %1111 = vmatprep.subr.mxu0 0.0
    %v1112 = vand.u32 %v726, 4294901760
    %1113 = vmatpush1.msra.mxu0 %v1112
    %1114 = vmatprep.subr.mxu0 0.0
    %v1115 = vand.u32 %v727, 4294901760
    %1116 = vmatpush1.msra.mxu0 %v1115
    %1117 = vmatprep.subr.mxu0 0.0
    %v1118 = vand.u32 %v728, 4294901760
    %1119 = vmatpush1.msra.mxu0 %v1118
    %1120 = vmatprep.subr.mxu0 0.0
    %v1121 = vand.u32 %v729, 4294901760
    %1122 = vmatpush1.msra.mxu0 %v1121
    %1123 = vmatprep.subr.mxu0 0.0
    %v1124 = vand.u32 %v730, 4294901760
    %1125 = vmatpush1.msra.mxu0 %v1124
    %1126 = vmatprep.subr.mxu0 0.0
    %v1127 = vand.u32 %v731, 4294901760
    %1128 = vmatpush1.msra.mxu0 %v1127
    %1129 = vmatprep.subr.mxu0 0.0
    %v1130 = vand.u32 %v732, 4294901760
    %1131 = vmatpush1.msra.mxu0 %v1130
    %1132 = vmatprep.subr.mxu0 0.0
    %v1133 = vand.u32 %v733, 4294901760
    %1134 = vmatpush1.msra.mxu0 %v1133
    %1135 = vmatprep.subr.mxu0 0.0
    %v1136 = vand.u32 %v734, 4294901760
    %1137 = vmatpush1.msra.mxu0 %v1136
    %1138 = vmatprep.subr.mxu0 0.0
    %v1139 = vand.u32 %v735, 4294901760
    %1140 = vmatpush1.msra.mxu0 %v1139
    %1141 = vmatprep.subr.mxu0 0.0
    %v1142 = vand.u32 %v736, 4294901760
    %1143 = vmatpush1.msra.mxu0 %v1142
    %1144 = vmatprep.subr.mxu0 0.0
    %v1145 = vand.u32 %v737, 4294901760
    %1146 = vmatpush1.msra.mxu0 %v1145
    %1147 = vmatprep.subr.mxu0 0.0
    %v1148 = vand.u32 %v738, 4294901760
    %1149 = vmatpush1.msra.mxu0 %v1148
    %1150 = vmatprep.subr.mxu0 0.0
    %v1151 = vand.u32 %v739, 4294901760
    %1152 = vmatpush1.msra.mxu0 %v1151
    %1153 = vmatprep.subr.mxu0 0.0
    %v1154 = vand.u32 %v740, 4294901760
    %1155 = vmatpush1.msra.mxu0 %v1154
    %1156 = vmatprep.subr.mxu0 0.0
    %v1157 = vand.u32 %v741, 4294901760
    %1158 = vmatpush1.msra.mxu0 %v1157
    %1159 = vmatprep.subr.mxu0 0.0
    %1160 = vmatpush1.msra.mxu0 0.0
    %1161 = vmatprep.subr.mxu0 0.0
    %1162 = vmatpush1.msra.mxu0 0.0
    %1163 = vmatprep.subr.mxu0 0.0
    %1164 = vmatpush1.msra.mxu0 0.0
    %1165 = vmatprep.subr.mxu0 0.0
    %1166 = vmatpush1.msra.mxu0 0.0
    %1167 = vmatprep.subr.mxu0 0.0
    %1168 = vmatpush1.msra.mxu0 0.0
    %1169 = vmatprep.subr.mxu0 0.0
    %1170 = vmatpush1.msra.mxu0 0.0
    %1171 = vmatprep.subr.mxu0 0.0
    %1172 = vmatpush1.msra.mxu0 0.0
    %1173 = vmatprep.subr.mxu0 0.0
    %1174 = vmatpush1.msra.mxu0 0.0
    %1175 = vmatprep.subr.mxu0 0.0
    %1176 = vmatpush1.msra.mxu0 0.0
    %1177 = vmatprep.subr.mxu0 0.0
    %1178 = vmatpush1.msra.mxu0 0.0
    %1179 = vmatprep.subr.mxu0 0.0
    %1180 = vmatpush1.msra.mxu0 0.0
    %1181 = vmatprep.subr.mxu0 0.0
    %1182 = vmatpush1.msra.mxu0 0.0
    %1183 = vmatprep.subr.mxu0 0.0
    %1184 = vmatpush1.msra.mxu0 0.0
    %1185 = vmatprep.subr.mxu0 0.0
    %1186 = vmatpush1.msra.mxu0 0.0
    %1187 = vmatprep.subr.mxu0 0.0
    %1188 = vmatpush1.msra.mxu0 0.0
    %1189 = vmatprep.subr.mxu0 0.0
    %1190 = vmatpush1.msra.mxu0 0.0
    %1191 = vmatprep.mubr.f32.mxu0 0.0
    %v1192 = vand.u32 %v723, 4294901760
    %v1193 = vsub.f32 %v723, %v1192
    %v1194 = vand.u32 %v1193, 4294901760
    %1195 = vmatmul.mubr.f32.gmra.mrb[0].mxu0 %v1194
    %v1196 = vpop.f32.mrb[0].mxu0
    %v1197 = vadd.f32 %v1101, %v1196
    %v1198 = vpop.f32.mrb[0].mxu0
    %1199 = vmatprep.mubr.f32.mxu0 0.0
    %v1200 = vand.u32 %v724, 4294901760
    %v1201 = vsub.f32 %v724, %v1200
    %v1202 = vand.u32 %v1201, 4294901760
    %1203 = vmatmul.mubr.f32.gmra.mrb[0].mxu0 %v1202
    %v1204 = vpop.f32.mrb[0].mxu0
    %v1205 = vadd.f32 %v1108, %v1204
    %v1206 = vpop.f32.mrb[0].mxu0
    %1207 = vdwg.mxu0
    %1208 = vmatprep.subr.mxu0 0.0
    %v1209 = vand.u32 %v726, 4294901760
    %v1210 = vsub.f32 %v726, %v1209
    %v1211 = vand.u32 %v1210, 4294901760
    %1212 = vmatpush1.msra.mxu0 %v1211
    %1213 = vmatprep.subr.mxu0 0.0
    %v1214 = vand.u32 %v727, 4294901760
    %v1215 = vsub.f32 %v727, %v1214
    %v1216 = vand.u32 %v1215, 4294901760
    %1217 = vmatpush1.msra.mxu0 %v1216
    %1218 = vmatprep.subr.mxu0 0.0
    %v1219 = vand.u32 %v728, 4294901760
    %v1220 = vsub.f32 %v728, %v1219
    %v1221 = vand.u32 %v1220, 4294901760
    %1222 = vmatpush1.msra.mxu0 %v1221
    %1223 = vmatprep.subr.mxu0 0.0
    %v1224 = vand.u32 %v729, 4294901760
    %v1225 = vsub.f32 %v729, %v1224
    %v1226 = vand.u32 %v1225, 4294901760
    %1227 = vmatpush1.msra.mxu0 %v1226
    %1228 = vmatprep.subr.mxu0 0.0
    %v1229 = vand.u32 %v730, 4294901760
    %v1230 = vsub.f32 %v730, %v1229
    %v1231 = vand.u32 %v1230, 4294901760
    %1232 = vmatpush1.msra.mxu0 %v1231
    %1233 = vmatprep.subr.mxu0 0.0
    %v1234 = vand.u32 %v731, 4294901760
    %v1235 = vsub.f32 %v731, %v1234
    %v1236 = vand.u32 %v1235, 4294901760
    %1237 = vmatpush1.msra.mxu0 %v1236
    %1238 = vmatprep.subr.mxu0 0.0
    %v1239 = vand.u32 %v732, 4294901760
    %v1240 = vsub.f32 %v732, %v1239
    %v1241 = vand.u32 %v1240, 4294901760
    %1242 = vmatpush1.msra.mxu0 %v1241
    %1243 = vmatprep.subr.mxu0 0.0
    %v1244 = vand.u32 %v733, 4294901760
    %v1245 = vsub.f32 %v733, %v1244
    %v1246 = vand.u32 %v1245, 4294901760
    %1247 = vmatpush1.msra.mxu0 %v1246
    %1248 = vmatprep.subr.mxu0 0.0
    %v1249 = vand.u32 %v734, 4294901760
    %v1250 = vsub.f32 %v734, %v1249
    %v1251 = vand.u32 %v1250, 4294901760
    %1252 = vmatpush1.msra.mxu0 %v1251
    %1253 = vmatprep.subr.mxu0 0.0
    %v1254 = vand.u32 %v735, 4294901760
    %v1255 = vsub.f32 %v735, %v1254
    %v1256 = vand.u32 %v1255, 4294901760
    %1257 = vmatpush1.msra.mxu0 %v1256
    %1258 = vmatprep.subr.mxu0 0.0
    %v1259 = vand.u32 %v736, 4294901760
    %v1260 = vsub.f32 %v736, %v1259
    %v1261 = vand.u32 %v1260, 4294901760
    %1262 = vmatpush1.msra.mxu0 %v1261
    %1263 = vmatprep.subr.mxu0 0.0
    %v1264 = vand.u32 %v737, 4294901760
    %v1265 = vsub.f32 %v737, %v1264
    %v1266 = vand.u32 %v1265, 4294901760
    %1267 = vmatpush1.msra.mxu0 %v1266
    %1268 = vmatprep.subr.mxu0 0.0
    %v1269 = vand.u32 %v738, 4294901760
    %v1270 = vsub.f32 %v738, %v1269
    %v1271 = vand.u32 %v1270, 4294901760
    %1272 = vmatpush1.msra.mxu0 %v1271
    %1273 = vmatprep.subr.mxu0 0.0
    %v1274 = vand.u32 %v739, 4294901760
    %v1275 = vsub.f32 %v739, %v1274
    %v1276 = vand.u32 %v1275, 4294901760
    %1277 = vmatpush1.msra.mxu0 %v1276
    %1278 = vmatprep.subr.mxu0 0.0
    %v1279 = vand.u32 %v740, 4294901760
    %v1280 = vsub.f32 %v740, %v1279
    %v1281 = vand.u32 %v1280, 4294901760
    %1282 = vmatpush1.msra.mxu0 %v1281
    %1283 = vmatprep.subr.mxu0 0.0
    %v1284 = vand.u32 %v741, 4294901760
    %v1285 = vsub.f32 %v741, %v1284
    %v1286 = vand.u32 %v1285, 4294901760
    %1287 = vmatpush1.msra.mxu0 %v1286
    %1288 = vmatprep.subr.mxu0 0.0
    %1289 = vmatpush1.msra.mxu0 0.0
    %1290 = vmatprep.subr.mxu0 0.0
    %1291 = vmatpush1.msra.mxu0 0.0
    %1292 = vmatprep.subr.mxu0 0.0
    %1293 = vmatpush1.msra.mxu0 0.0
    %1294 = vmatprep.subr.mxu0 0.0
    %1295 = vmatpush1.msra.mxu0 0.0
    %1296 = vmatprep.subr.mxu0 0.0
    %1297 = vmatpush1.msra.mxu0 0.0
    %1298 = vmatprep.subr.mxu0 0.0
    %1299 = vmatpush1.msra.mxu0 0.0
    %1300 = vmatprep.subr.mxu0 0.0
    %1301 = vmatpush1.msra.mxu0 0.0
    %1302 = vmatprep.subr.mxu0 0.0
    %1303 = vmatpush1.msra.mxu0 0.0
    %1304 = vmatprep.subr.mxu0 0.0
    %1305 = vmatpush1.msra.mxu0 0.0
    %1306 = vmatprep.subr.mxu0 0.0
    %1307 = vmatpush1.msra.mxu0 0.0
    %1308 = vmatprep.subr.mxu0 0.0
    %1309 = vmatpush1.msra.mxu0 0.0
    %1310 = vmatprep.subr.mxu0 0.0
    %1311 = vmatpush1.msra.mxu0 0.0
    %1312 = vmatprep.subr.mxu0 0.0
    %1313 = vmatpush1.msra.mxu0 0.0
    %1314 = vmatprep.subr.mxu0 0.0
    %1315 = vmatpush1.msra.mxu0 0.0
    %1316 = vmatprep.subr.mxu0 0.0
    %1317 = vmatpush1.msra.mxu0 0.0
    %1318 = vmatprep.subr.mxu0 0.0
    %1319 = vmatpush1.msra.mxu0 0.0
    %1320 = vmatprep.mubr.f32.mxu0 0.0
    %v1321 = vand.u32 %v723, 4294901760
    %1322 = vmatmul.mubr.f32.gmra.mrb[0].mxu0 %v1321
    %v1323 = vpop.f32.mrb[0].mxu0
    %v1324 = vadd.f32 %v1197, %v1323
    %v1325 = vpop.f32.mrb[0].mxu0
    %1326 = vmatprep.mubr.f32.mxu0 0.0
    %v1327 = vand.u32 %v724, 4294901760
    %1328 = vmatmul.mubr.f32.gmra.mrb[0].mxu0 %v1327
    %v1329 = vpop.f32.mrb[0].mxu0
    %v1330 = vadd.f32 %v1205, %v1329
    %v1331 = vpop.f32.mrb[0].mxu0
    %1332 = vdwg.mxu0
    %1333 = vmatprep.subr.mxu0 0.0
    %v1334 = vand.u32 %v726, 4294901760
    %1335 = vmatpush1.msra.mxu0 %v1334
    %1336 = vmatprep.subr.mxu0 0.0
    %v1337 = vand.u32 %v727, 4294901760
    %1338 = vmatpush1.msra.mxu0 %v1337
    %1339 = vmatprep.subr.mxu0 0.0
    %v1340 = vand.u32 %v728, 4294901760
    %1341 = vmatpush1.msra.mxu0 %v1340
    %1342 = vmatprep.subr.mxu0 0.0
    %v1343 = vand.u32 %v729, 4294901760
    %1344 = vmatpush1.msra.mxu0 %v1343
    %1345 = vmatprep.subr.mxu0 0.0
    %v1346 = vand.u32 %v730, 4294901760
    %1347 = vmatpush1.msra.mxu0 %v1346
    %1348 = vmatprep.subr.mxu0 0.0
    %v1349 = vand.u32 %v731, 4294901760
    %1350 = vmatpush1.msra.mxu0 %v1349
    %1351 = vmatprep.subr.mxu0 0.0
    %v1352 = vand.u32 %v732, 4294901760
    %1353 = vmatpush1.msra.mxu0 %v1352
    %1354 = vmatprep.subr.mxu0 0.0
    %v1355 = vand.u32 %v733, 4294901760
    %1356 = vmatpush1.msra.mxu0 %v1355
    %1357 = vmatprep.subr.mxu0 0.0
    %v1358 = vand.u32 %v734, 4294901760
    %1359 = vmatpush1.msra.mxu0 %v1358
    %1360 = vmatprep.subr.mxu0 0.0
    %v1361 = vand.u32 %v735, 4294901760
    %1362 = vmatpush1.msra.mxu0 %v1361
    %1363 = vmatprep.subr.mxu0 0.0
    %v1364 = vand.u32 %v736, 4294901760
    %1365 = vmatpush1.msra.mxu0 %v1364
    %1366 = vmatprep.subr.mxu0 0.0
    %v1367 = vand.u32 %v737, 4294901760
    %1368 = vmatpush1.msra.mxu0 %v1367
    %1369 = vmatprep.subr.mxu0 0.0
    %v1370 = vand.u32 %v738, 4294901760
    %1371 = vmatpush1.msra.mxu0 %v1370
    %1372 = vmatprep.subr.mxu0 0.0
    %v1373 = vand.u32 %v739, 4294901760
    %1374 = vmatpush1.msra.mxu0 %v1373
    %1375 = vmatprep.subr.mxu0 0.0
    %v1376 = vand.u32 %v740, 4294901760
    %1377 = vmatpush1.msra.mxu0 %v1376
    %1378 = vmatprep.subr.mxu0 0.0
    %v1379 = vand.u32 %v741, 4294901760
    %1380 = vmatpush1.msra.mxu0 %v1379
    %1381 = vmatprep.subr.mxu0 0.0
    %1382 = vmatpush1.msra.mxu0 0.0
    %1383 = vmatprep.subr.mxu0 0.0
    %1384 = vmatpush1.msra.mxu0 0.0
    %1385 = vmatprep.subr.mxu0 0.0
    %1386 = vmatpush1.msra.mxu0 0.0
    %1387 = vmatprep.subr.mxu0 0.0
    %1388 = vmatpush1.msra.mxu0 0.0
    %1389 = vmatprep.subr.mxu0 0.0
    %1390 = vmatpush1.msra.mxu0 0.0
    %1391 = vmatprep.subr.mxu0 0.0
    %1392 = vmatpush1.msra.mxu0 0.0
    %1393 = vmatprep.subr.mxu0 0.0
    %1394 = vmatpush1.msra.mxu0 0.0
    %1395 = vmatprep.subr.mxu0 0.0
    %1396 = vmatpush1.msra.mxu0 0.0
    %1397 = vmatprep.subr.mxu0 0.0
    %1398 = vmatpush1.msra.mxu0 0.0
    %1399 = vmatprep.subr.mxu0 0.0
    %1400 = vmatpush1.msra.mxu0 0.0
    %1401 = vmatprep.subr.mxu0 0.0
    %1402 = vmatpush1.msra.mxu0 0.0
    %1403 = vmatprep.subr.mxu0 0.0
    %1404 = vmatpush1.msra.mxu0 0.0
    %1405 = vmatprep.subr.mxu0 0.0
    %1406 = vmatpush1.msra.mxu0 0.0
    %1407 = vmatprep.subr.mxu0 0.0
    %1408 = vmatpush1.msra.mxu0 0.0
    %1409 = vmatprep.subr.mxu0 0.0
    %1410 = vmatpush1.msra.mxu0 0.0
    %1411 = vmatprep.subr.mxu0 0.0
    %1412 = vmatpush1.msra.mxu0 0.0
    %1413 = vmatprep.mubr.f32.mxu0 0.0
    %v1414 = vand.u32 %v723, 4294901760
    %1415 = vmatmul.mubr.f32.gmra.mrb[0].mxu0 %v1414
    %v1416 = vpop.f32.mrb[0].mxu0
    %v1417 = vadd.f32 %v1324, %v1416
    %v1418 = vpop.f32.mrb[0].mxu0
    %1419 = vmatprep.mubr.f32.mxu0 0.0
    %v1420 = vand.u32 %v724, 4294901760
    %1421 = vmatmul.mubr.f32.gmra.mrb[0].mxu0 %v1420
    %v1422 = vpop.f32.mrb[0].mxu0
    %v1423 = vadd.f32 %v1330, %v1422
    %v1424 = vpop.f32.mrb[0].mxu0
    %1425 = vdwg.mxu0
    %v1426 = vmul.f32 %v714, %v714
    %v1427 = vmul.f32 %v720, %v720
    %v1428 = vsub.f32 %v1417, %v1426
    %v1429 = vsub.f32 %v1423, %v1427
    %v1430 = vmax.f32 %v1428, 0.0
    %v1431 = vmax.f32 %v1429, 0.0
    %v1432 = vadd.f32 %v1430, 1e-08
    %v1433 = vadd.f32 %v1431, 1e-08
    %v1434 = vrsqrt.pop %v1432
    %v1435 = vrsqrt.pop %v1433
    %v1436 = vlaneseq
    %v1437 = vand.u32 %v1436, 127
    %vm1438 = vcmp.eq.s32.totalorder %v1437, 6
    %v1439 = vsub.f32 0.0, %v714
    %v1440 = vsub.f32 0.0, %v720
    %v1441 = vmul.f32 %v1439, %v1434
    %v1442 = vmul.f32 %v1440, %v1435
    %v1443 = vsel %vm1438, 1.0, %v1441
    %v1444 = vsel %vm1438, 1.0, %v1442
    %v1445 = vld [vmem:[%s2] sm:$0xff]
    %v1446 = vld [vmem:[%s2 + $0x8] sm:$0xff]
    %vm1447 = vcmask 64512
    %v1449 = vsel %vm1447, %v1434, 0
    %v1452 = vsel %vm1447, %v1435, 0
    %v1454 = vand.u32 %v1446, 4294901760
    %1455 = vmatprep.subr.mxu0 %v1454
    %v1456 = vand.u32 %v1445, 4294901760
    %1457 = vmatpush1.msra.mxu0 %v1456
    %1458 = vmatprep.subr.mxu0 0.0
    %1459 = vmatpush1.msra.mxu0 0.0
    %1460 = vmatprep.subr.mxu0 0.0
    %1461 = vmatpush1.msra.mxu0 0.0
    %1462 = vmatprep.subr.mxu0 0.0
    %1463 = vmatpush1.msra.mxu0 0.0
    %1464 = vmatprep.subr.mxu0 0.0
    %1465 = vmatpush1.msra.mxu0 0.0
    %1466 = vmatprep.subr.mxu0 0.0
    %1467 = vmatpush1.msra.mxu0 0.0
    %1468 = vmatprep.subr.mxu0 0.0
    %1469 = vmatpush1.msra.mxu0 0.0
    %1470 = vmatprep.subr.mxu0 0.0
    %1471 = vmatpush1.msra.mxu0 0.0
    %1472 = vmatprep.subr.mxu0 0.0
    %1473 = vmatpush1.msra.mxu0 0.0
    %1474 = vmatprep.subr.mxu0 0.0
    %1475 = vmatpush1.msra.mxu0 0.0
    %1476 = vmatprep.subr.mxu0 0.0
    %1477 = vmatpush1.msra.mxu0 0.0
    %1478 = vmatprep.subr.mxu0 0.0
    %1479 = vmatpush1.msra.mxu0 0.0
    %1480 = vmatprep.subr.mxu0 0.0
    %1481 = vmatpush1.msra.mxu0 0.0
    %1482 = vmatprep.subr.mxu0 0.0
    %1483 = vmatpush1.msra.mxu0 0.0
    %1484 = vmatprep.subr.mxu0 0.0
    %1485 = vmatpush1.msra.mxu0 0.0
    %1486 = vmatprep.subr.mxu0 0.0
    %1487 = vmatpush1.msra.mxu0 0.0
    %1488 = vmatprep.subr.mxu0 0.0
    %1489 = vmatpush1.msra.mxu0 0.0
    %1490 = vmatprep.subr.mxu0 0.0
    %1491 = vmatpush1.msra.mxu0 0.0
    %1492 = vmatprep.subr.mxu0 0.0
    %1493 = vmatpush1.msra.mxu0 0.0
    %1494 = vmatprep.subr.mxu0 0.0
    %1495 = vmatpush1.msra.mxu0 0.0
    %1496 = vmatprep.subr.mxu0 0.0
    %1497 = vmatpush1.msra.mxu0 0.0
    %1498 = vmatprep.subr.mxu0 0.0
    %1499 = vmatpush1.msra.mxu0 0.0
    %1500 = vmatprep.subr.mxu0 0.0
    %1501 = vmatpush1.msra.mxu0 0.0
    %1502 = vmatprep.subr.mxu0 0.0
    %1503 = vmatpush1.msra.mxu0 0.0
    %1504 = vmatprep.subr.mxu0 0.0
    %1505 = vmatpush1.msra.mxu0 0.0
    %1506 = vmatprep.subr.mxu0 0.0
    %1507 = vmatpush1.msra.mxu0 0.0
    %1508 = vmatprep.subr.mxu0 0.0
    %1509 = vmatpush1.msra.mxu0 0.0
    %1510 = vmatprep.subr.mxu0 0.0
    %1511 = vmatpush1.msra.mxu0 0.0
    %1512 = vmatprep.subr.mxu0 0.0
    %1513 = vmatpush1.msra.mxu0 0.0
    %1514 = vmatprep.subr.mxu0 0.0
    %1515 = vmatpush1.msra.mxu0 0.0
    %1516 = vmatprep.subr.mxu0 0.0
    %1517 = vmatpush1.msra.mxu0 0.0
    %1518 = vmatprep.subr.mxu0 0.0
    %1519 = vmatpush1.msra.mxu0 0.0
    %1520 = vmatprep.mubr.f32.mxu0 0.0
    %v1521 = vand.u32 %v1449, 4294901760
    %v1522 = vsub.f32 %v1449, %v1521
    %v1523 = vand.u32 %v1522, 4294901760
    %v1524 = vsub.f32 %v1522, %v1523
    %v1525 = vand.u32 %v1524, 4294901760
    %1526 = vmatmul.mubr.f32.gmra.mrb[0].mxu0 %v1525
    %v1527 = vpop.f32.mrb[0].mxu0
    %v1528 = vadd.f32 0.0, %v1527
    %v1529 = vpop.f32.mrb[0].mxu0
    %v1530 = vadd.f32 0.0, %v1529
    %1531 = vmatprep.mubr.f32.mxu0 0.0
    %v1532 = vand.u32 %v1452, 4294901760
    %v1533 = vsub.f32 %v1452, %v1532
    %v1534 = vand.u32 %v1533, 4294901760
    %v1535 = vsub.f32 %v1533, %v1534
    %v1536 = vand.u32 %v1535, 4294901760
    %1537 = vmatmul.mubr.f32.gmra.mrb[0].mxu0 %v1536
    %v1538 = vpop.f32.mrb[0].mxu0
    %v1539 = vadd.f32 0.0, %v1538
    %v1540 = vpop.f32.mrb[0].mxu0
    %v1541 = vadd.f32 0.0, %v1540
    %1542 = vdwg.mxu0
    %v1543 = vand.u32 %v1446, 4294901760
    %v1544 = vsub.f32 %v1446, %v1543
    %v1545 = vand.u32 %v1544, 4294901760
    %v1546 = vsub.f32 %v1544, %v1545
    %v1547 = vand.u32 %v1546, 4294901760
    %1548 = vmatprep.subr.mxu0 %v1547
    %v1549 = vand.u32 %v1445, 4294901760
    %v1550 = vsub.f32 %v1445, %v1549
    %v1551 = vand.u32 %v1550, 4294901760
    %v1552 = vsub.f32 %v1550, %v1551
    %v1553 = vand.u32 %v1552, 4294901760
    %1554 = vmatpush1.msra.mxu0 %v1553
    %1555 = vmatprep.subr.mxu0 0.0
    %1556 = vmatpush1.msra.mxu0 0.0
    %1557 = vmatprep.subr.mxu0 0.0
    %1558 = vmatpush1.msra.mxu0 0.0
    %1559 = vmatprep.subr.mxu0 0.0
    %1560 = vmatpush1.msra.mxu0 0.0
    %1561 = vmatprep.subr.mxu0 0.0
    %1562 = vmatpush1.msra.mxu0 0.0
    %1563 = vmatprep.subr.mxu0 0.0
    %1564 = vmatpush1.msra.mxu0 0.0
    %1565 = vmatprep.subr.mxu0 0.0
    %1566 = vmatpush1.msra.mxu0 0.0
    %1567 = vmatprep.subr.mxu0 0.0
    %1568 = vmatpush1.msra.mxu0 0.0
    %1569 = vmatprep.subr.mxu0 0.0
    %1570 = vmatpush1.msra.mxu0 0.0
    %1571 = vmatprep.subr.mxu0 0.0
    %1572 = vmatpush1.msra.mxu0 0.0
    %1573 = vmatprep.subr.mxu0 0.0
    %1574 = vmatpush1.msra.mxu0 0.0
    %1575 = vmatprep.subr.mxu0 0.0
    %1576 = vmatpush1.msra.mxu0 0.0
    %1577 = vmatprep.subr.mxu0 0.0
    %1578 = vmatpush1.msra.mxu0 0.0
    %1579 = vmatprep.subr.mxu0 0.0
    %1580 = vmatpush1.msra.mxu0 0.0
    %1581 = vmatprep.subr.mxu0 0.0
    %1582 = vmatpush1.msra.mxu0 0.0
    %1583 = vmatprep.subr.mxu0 0.0
    %1584 = vmatpush1.msra.mxu0 0.0
    %1585 = vmatprep.subr.mxu0 0.0
    %1586 = vmatpush1.msra.mxu0 0.0
    %1587 = vmatprep.subr.mxu0 0.0
    %1588 = vmatpush1.msra.mxu0 0.0
    %1589 = vmatprep.subr.mxu0 0.0
    %1590 = vmatpush1.msra.mxu0 0.0
    %1591 = vmatprep.subr.mxu0 0.0
    %1592 = vmatpush1.msra.mxu0 0.0
    %1593 = vmatprep.subr.mxu0 0.0
    %1594 = vmatpush1.msra.mxu0 0.0
    %1595 = vmatprep.subr.mxu0 0.0
    %1596 = vmatpush1.msra.mxu0 0.0
    %1597 = vmatprep.subr.mxu0 0.0
    %1598 = vmatpush1.msra.mxu0 0.0
    %1599 = vmatprep.subr.mxu0 0.0
    %1600 = vmatpush1.msra.mxu0 0.0
    %1601 = vmatprep.subr.mxu0 0.0
    %1602 = vmatpush1.msra.mxu0 0.0
    %1603 = vmatprep.subr.mxu0 0.0
    %1604 = vmatpush1.msra.mxu0 0.0
    %1605 = vmatprep.subr.mxu0 0.0
    %1606 = vmatpush1.msra.mxu0 0.0
    %1607 = vmatprep.subr.mxu0 0.0
    %1608 = vmatpush1.msra.mxu0 0.0
    %1609 = vmatprep.subr.mxu0 0.0
    %1610 = vmatpush1.msra.mxu0 0.0
    %1611 = vmatprep.subr.mxu0 0.0
    %1612 = vmatpush1.msra.mxu0 0.0
    %1613 = vmatprep.subr.mxu0 0.0
    %1614 = vmatpush1.msra.mxu0 0.0
    %1615 = vmatprep.subr.mxu0 0.0
    %1616 = vmatpush1.msra.mxu0 0.0
    %1617 = vmatprep.mubr.f32.mxu0 0.0
    %v1618 = vand.u32 %v1449, 4294901760
    %1619 = vmatmul.mubr.f32.gmra.mrb[0].mxu0 %v1618
    %v1620 = vpop.f32.mrb[0].mxu0
    %v1621 = vadd.f32 %v1528, %v1620
    %v1622 = vpop.f32.mrb[0].mxu0
    %v1623 = vadd.f32 %v1530, %v1622
    %1624 = vmatprep.mubr.f32.mxu0 0.0
    %v1625 = vand.u32 %v1452, 4294901760
    %1626 = vmatmul.mubr.f32.gmra.mrb[0].mxu0 %v1625
    %v1627 = vpop.f32.mrb[0].mxu0
    %v1628 = vadd.f32 %v1539, %v1627
    %v1629 = vpop.f32.mrb[0].mxu0
    %v1630 = vadd.f32 %v1541, %v1629
    %1631 = vdwg.mxu0
    %v1632 = vand.u32 %v1446, 4294901760
    %v1633 = vsub.f32 %v1446, %v1632
    %1634 = vmatprep.subr.mxu0 %v1633
    %v1635 = vand.u32 %v1445, 4294901760
    %v1636 = vsub.f32 %v1445, %v1635
    %1637 = vmatpush1.msra.mxu0 %v1636
    %1638 = vmatprep.subr.mxu0 0.0
    %1639 = vmatpush1.msra.mxu0 0.0
    %1640 = vmatprep.subr.mxu0 0.0
    %1641 = vmatpush1.msra.mxu0 0.0
    %1642 = vmatprep.subr.mxu0 0.0
    %1643 = vmatpush1.msra.mxu0 0.0
    %1644 = vmatprep.subr.mxu0 0.0
    %1645 = vmatpush1.msra.mxu0 0.0
    %1646 = vmatprep.subr.mxu0 0.0
    %1647 = vmatpush1.msra.mxu0 0.0
    %1648 = vmatprep.subr.mxu0 0.0
    %1649 = vmatpush1.msra.mxu0 0.0
    %1650 = vmatprep.subr.mxu0 0.0
    %1651 = vmatpush1.msra.mxu0 0.0
    %1652 = vmatprep.subr.mxu0 0.0
    %1653 = vmatpush1.msra.mxu0 0.0
    %1654 = vmatprep.subr.mxu0 0.0
    %1655 = vmatpush1.msra.mxu0 0.0
    %1656 = vmatprep.subr.mxu0 0.0
    %1657 = vmatpush1.msra.mxu0 0.0
    %1658 = vmatprep.subr.mxu0 0.0
    %1659 = vmatpush1.msra.mxu0 0.0
    %1660 = vmatprep.subr.mxu0 0.0
    %1661 = vmatpush1.msra.mxu0 0.0
    %1662 = vmatprep.subr.mxu0 0.0
    %1663 = vmatpush1.msra.mxu0 0.0
    %1664 = vmatprep.subr.mxu0 0.0
    %1665 = vmatpush1.msra.mxu0 0.0
    %1666 = vmatprep.subr.mxu0 0.0
    %1667 = vmatpush1.msra.mxu0 0.0
    %1668 = vmatprep.subr.mxu0 0.0
    %1669 = vmatpush1.msra.mxu0 0.0
    %1670 = vmatprep.subr.mxu0 0.0
    %1671 = vmatpush1.msra.mxu0 0.0
    %1672 = vmatprep.subr.mxu0 0.0
    %1673 = vmatpush1.msra.mxu0 0.0
    %1674 = vmatprep.subr.mxu0 0.0
    %1675 = vmatpush1.msra.mxu0 0.0
    %1676 = vmatprep.subr.mxu0 0.0
    %1677 = vmatpush1.msra.mxu0 0.0
    %1678 = vmatprep.subr.mxu0 0.0
    %1679 = vmatpush1.msra.mxu0 0.0
    %1680 = vmatprep.subr.mxu0 0.0
    %1681 = vmatpush1.msra.mxu0 0.0
    %1682 = vmatprep.subr.mxu0 0.0
    %1683 = vmatpush1.msra.mxu0 0.0
    %1684 = vmatprep.subr.mxu0 0.0
    %1685 = vmatpush1.msra.mxu0 0.0
    %1686 = vmatprep.subr.mxu0 0.0
    %1687 = vmatpush1.msra.mxu0 0.0
    %1688 = vmatprep.subr.mxu0 0.0
    %1689 = vmatpush1.msra.mxu0 0.0
    %1690 = vmatprep.subr.mxu0 0.0
    %1691 = vmatpush1.msra.mxu0 0.0
    %1692 = vmatprep.subr.mxu0 0.0
    %1693 = vmatpush1.msra.mxu0 0.0
    %1694 = vmatprep.subr.mxu0 0.0
    %1695 = vmatpush1.msra.mxu0 0.0
    %1696 = vmatprep.subr.mxu0 0.0
    %1697 = vmatpush1.msra.mxu0 0.0
    %1698 = vmatprep.subr.mxu0 0.0
    %1699 = vmatpush1.msra.mxu0 0.0
    %1700 = vmatprep.mubr.f32.mxu0 0.0
    %v1701 = vand.u32 %v1449, 4294901760
    %v1702 = vsub.f32 %v1449, %v1701
    %1703 = vmatmul.mubr.f32.gmra.mrb[0].mxu0 %v1702
    %v1704 = vpop.f32.mrb[0].mxu0
    %v1705 = vadd.f32 %v1621, %v1704
    %v1706 = vpop.f32.mrb[0].mxu0
    %v1707 = vadd.f32 %v1623, %v1706
    %1708 = vmatprep.mubr.f32.mxu0 0.0
    %v1709 = vand.u32 %v1452, 4294901760
    %v1710 = vsub.f32 %v1452, %v1709
    %1711 = vmatmul.mubr.f32.gmra.mrb[0].mxu0 %v1710
    %v1712 = vpop.f32.mrb[0].mxu0
    %v1713 = vadd.f32 %v1628, %v1712
    %v1714 = vpop.f32.mrb[0].mxu0
    %v1715 = vadd.f32 %v1630, %v1714
    %1716 = vdwg.mxu0
    %v1717 = vand.u32 %v1446, 4294901760
    %1718 = vmatprep.subr.mxu0 %v1717
    %v1719 = vand.u32 %v1445, 4294901760
    %1720 = vmatpush1.msra.mxu0 %v1719
    %1721 = vmatprep.subr.mxu0 0.0
    %1722 = vmatpush1.msra.mxu0 0.0
    %1723 = vmatprep.subr.mxu0 0.0
    %1724 = vmatpush1.msra.mxu0 0.0
    %1725 = vmatprep.subr.mxu0 0.0
    %1726 = vmatpush1.msra.mxu0 0.0
    %1727 = vmatprep.subr.mxu0 0.0
    %1728 = vmatpush1.msra.mxu0 0.0
    %1729 = vmatprep.subr.mxu0 0.0
    %1730 = vmatpush1.msra.mxu0 0.0
    %1731 = vmatprep.subr.mxu0 0.0
    %1732 = vmatpush1.msra.mxu0 0.0
    %1733 = vmatprep.subr.mxu0 0.0
    %1734 = vmatpush1.msra.mxu0 0.0
    %1735 = vmatprep.subr.mxu0 0.0
    %1736 = vmatpush1.msra.mxu0 0.0
    %1737 = vmatprep.subr.mxu0 0.0
    %1738 = vmatpush1.msra.mxu0 0.0
    %1739 = vmatprep.subr.mxu0 0.0
    %1740 = vmatpush1.msra.mxu0 0.0
    %1741 = vmatprep.subr.mxu0 0.0
    %1742 = vmatpush1.msra.mxu0 0.0
    %1743 = vmatprep.subr.mxu0 0.0
    %1744 = vmatpush1.msra.mxu0 0.0
    %1745 = vmatprep.subr.mxu0 0.0
    %1746 = vmatpush1.msra.mxu0 0.0
    %1747 = vmatprep.subr.mxu0 0.0
    %1748 = vmatpush1.msra.mxu0 0.0
    %1749 = vmatprep.subr.mxu0 0.0
    %1750 = vmatpush1.msra.mxu0 0.0
    %1751 = vmatprep.subr.mxu0 0.0
    %1752 = vmatpush1.msra.mxu0 0.0
    %1753 = vmatprep.subr.mxu0 0.0
    %1754 = vmatpush1.msra.mxu0 0.0
    %1755 = vmatprep.subr.mxu0 0.0
    %1756 = vmatpush1.msra.mxu0 0.0
    %1757 = vmatprep.subr.mxu0 0.0
    %1758 = vmatpush1.msra.mxu0 0.0
    %1759 = vmatprep.subr.mxu0 0.0
    %1760 = vmatpush1.msra.mxu0 0.0
    %1761 = vmatprep.subr.mxu0 0.0
    %1762 = vmatpush1.msra.mxu0 0.0
    %1763 = vmatprep.subr.mxu0 0.0
    %1764 = vmatpush1.msra.mxu0 0.0
    %1765 = vmatprep.subr.mxu0 0.0
    %1766 = vmatpush1.msra.mxu0 0.0
    %1767 = vmatprep.subr.mxu0 0.0
    %1768 = vmatpush1.msra.mxu0 0.0
    %1769 = vmatprep.subr.mxu0 0.0
    %1770 = vmatpush1.msra.mxu0 0.0
    %1771 = vmatprep.subr.mxu0 0.0
    %1772 = vmatpush1.msra.mxu0 0.0
    %1773 = vmatprep.subr.mxu0 0.0
    %1774 = vmatpush1.msra.mxu0 0.0
    %1775 = vmatprep.subr.mxu0 0.0
    %1776 = vmatpush1.msra.mxu0 0.0
    %1777 = vmatprep.subr.mxu0 0.0
    %1778 = vmatpush1.msra.mxu0 0.0
    %1779 = vmatprep.subr.mxu0 0.0
    %1780 = vmatpush1.msra.mxu0 0.0
    %1781 = vmatprep.subr.mxu0 0.0
    %1782 = vmatpush1.msra.mxu0 0.0
    %1783 = vmatprep.mubr.f32.mxu0 0.0
    %v1784 = vand.u32 %v1449, 4294901760
    %v1785 = vsub.f32 %v1449, %v1784
    %v1786 = vand.u32 %v1785, 4294901760
    %1787 = vmatmul.mubr.f32.gmra.mrb[0].mxu0 %v1786
    %v1788 = vpop.f32.mrb[0].mxu0
    %v1789 = vadd.f32 %v1705, %v1788
    %v1790 = vpop.f32.mrb[0].mxu0
    %v1791 = vadd.f32 %v1707, %v1790
    %1792 = vmatprep.mubr.f32.mxu0 0.0
    %v1793 = vand.u32 %v1452, 4294901760
    %v1794 = vsub.f32 %v1452, %v1793
    %v1795 = vand.u32 %v1794, 4294901760
    %1796 = vmatmul.mubr.f32.gmra.mrb[0].mxu0 %v1795
    %v1797 = vpop.f32.mrb[0].mxu0
    %v1798 = vadd.f32 %v1713, %v1797
    %v1799 = vpop.f32.mrb[0].mxu0
    %v1800 = vadd.f32 %v1715, %v1799
    %1801 = vdwg.mxu0
    %v1802 = vand.u32 %v1446, 4294901760
    %v1803 = vsub.f32 %v1446, %v1802
    %v1804 = vand.u32 %v1803, 4294901760
    %1805 = vmatprep.subr.mxu0 %v1804
    %v1806 = vand.u32 %v1445, 4294901760
    %v1807 = vsub.f32 %v1445, %v1806
    %v1808 = vand.u32 %v1807, 4294901760
    %1809 = vmatpush1.msra.mxu0 %v1808
    %1810 = vmatprep.subr.mxu0 0.0
    %1811 = vmatpush1.msra.mxu0 0.0
    %1812 = vmatprep.subr.mxu0 0.0
    %1813 = vmatpush1.msra.mxu0 0.0
    %1814 = vmatprep.subr.mxu0 0.0
    %1815 = vmatpush1.msra.mxu0 0.0
    %1816 = vmatprep.subr.mxu0 0.0
    %1817 = vmatpush1.msra.mxu0 0.0
    %1818 = vmatprep.subr.mxu0 0.0
    %1819 = vmatpush1.msra.mxu0 0.0
    %1820 = vmatprep.subr.mxu0 0.0
    %1821 = vmatpush1.msra.mxu0 0.0
    %1822 = vmatprep.subr.mxu0 0.0
    %1823 = vmatpush1.msra.mxu0 0.0
    %1824 = vmatprep.subr.mxu0 0.0
    %1825 = vmatpush1.msra.mxu0 0.0
    %1826 = vmatprep.subr.mxu0 0.0
    %1827 = vmatpush1.msra.mxu0 0.0
    %1828 = vmatprep.subr.mxu0 0.0
    %1829 = vmatpush1.msra.mxu0 0.0
    %1830 = vmatprep.subr.mxu0 0.0
    %1831 = vmatpush1.msra.mxu0 0.0
    %1832 = vmatprep.subr.mxu0 0.0
    %1833 = vmatpush1.msra.mxu0 0.0
    %1834 = vmatprep.subr.mxu0 0.0
    %1835 = vmatpush1.msra.mxu0 0.0
    %1836 = vmatprep.subr.mxu0 0.0
    %1837 = vmatpush1.msra.mxu0 0.0
    %1838 = vmatprep.subr.mxu0 0.0
    %1839 = vmatpush1.msra.mxu0 0.0
    %1840 = vmatprep.subr.mxu0 0.0
    %1841 = vmatpush1.msra.mxu0 0.0
    %1842 = vmatprep.subr.mxu0 0.0
    %1843 = vmatpush1.msra.mxu0 0.0
    %1844 = vmatprep.subr.mxu0 0.0
    %1845 = vmatpush1.msra.mxu0 0.0
    %1846 = vmatprep.subr.mxu0 0.0
    %1847 = vmatpush1.msra.mxu0 0.0
    %1848 = vmatprep.subr.mxu0 0.0
    %1849 = vmatpush1.msra.mxu0 0.0
    %1850 = vmatprep.subr.mxu0 0.0
    %1851 = vmatpush1.msra.mxu0 0.0
    %1852 = vmatprep.subr.mxu0 0.0
    %1853 = vmatpush1.msra.mxu0 0.0
    %1854 = vmatprep.subr.mxu0 0.0
    %1855 = vmatpush1.msra.mxu0 0.0
    %1856 = vmatprep.subr.mxu0 0.0
    %1857 = vmatpush1.msra.mxu0 0.0
    %1858 = vmatprep.subr.mxu0 0.0
    %1859 = vmatpush1.msra.mxu0 0.0
    %1860 = vmatprep.subr.mxu0 0.0
    %1861 = vmatpush1.msra.mxu0 0.0
    %1862 = vmatprep.subr.mxu0 0.0
    %1863 = vmatpush1.msra.mxu0 0.0
    %1864 = vmatprep.subr.mxu0 0.0
    %1865 = vmatpush1.msra.mxu0 0.0
    %1866 = vmatprep.subr.mxu0 0.0
    %1867 = vmatpush1.msra.mxu0 0.0
    %1868 = vmatprep.subr.mxu0 0.0
    %1869 = vmatpush1.msra.mxu0 0.0
    %1870 = vmatprep.subr.mxu0 0.0
    %1871 = vmatpush1.msra.mxu0 0.0
    %1872 = vmatprep.mubr.f32.mxu0 0.0
    %v1873 = vand.u32 %v1449, 4294901760
    %1874 = vmatmul.mubr.f32.gmra.mrb[0].mxu0 %v1873
    %v1875 = vpop.f32.mrb[0].mxu0
    %v1876 = vadd.f32 %v1789, %v1875
    %v1877 = vpop.f32.mrb[0].mxu0
    %v1878 = vadd.f32 %v1791, %v1877
    %1879 = vmatprep.mubr.f32.mxu0 0.0
    %v1880 = vand.u32 %v1452, 4294901760
    %1881 = vmatmul.mubr.f32.gmra.mrb[0].mxu0 %v1880
    %v1882 = vpop.f32.mrb[0].mxu0
    %v1883 = vadd.f32 %v1798, %v1882
    %v1884 = vpop.f32.mrb[0].mxu0
    %v1885 = vadd.f32 %v1800, %v1884
    %1886 = vdwg.mxu0
    %v1887 = vand.u32 %v1446, 4294901760
    %1888 = vmatprep.subr.mxu0 %v1887
    %v1889 = vand.u32 %v1445, 4294901760
    %1890 = vmatpush1.msra.mxu0 %v1889
    %1891 = vmatprep.subr.mxu0 0.0
    %1892 = vmatpush1.msra.mxu0 0.0
    %1893 = vmatprep.subr.mxu0 0.0
    %1894 = vmatpush1.msra.mxu0 0.0
    %1895 = vmatprep.subr.mxu0 0.0
    %1896 = vmatpush1.msra.mxu0 0.0
    %1897 = vmatprep.subr.mxu0 0.0
    %1898 = vmatpush1.msra.mxu0 0.0
    %1899 = vmatprep.subr.mxu0 0.0
    %1900 = vmatpush1.msra.mxu0 0.0
    %1901 = vmatprep.subr.mxu0 0.0
    %1902 = vmatpush1.msra.mxu0 0.0
    %1903 = vmatprep.subr.mxu0 0.0
    %1904 = vmatpush1.msra.mxu0 0.0
    %1905 = vmatprep.subr.mxu0 0.0
    %1906 = vmatpush1.msra.mxu0 0.0
    %1907 = vmatprep.subr.mxu0 0.0
    %1908 = vmatpush1.msra.mxu0 0.0
    %1909 = vmatprep.subr.mxu0 0.0
    %1910 = vmatpush1.msra.mxu0 0.0
    %1911 = vmatprep.subr.mxu0 0.0
    %1912 = vmatpush1.msra.mxu0 0.0
    %1913 = vmatprep.subr.mxu0 0.0
    %1914 = vmatpush1.msra.mxu0 0.0
    %1915 = vmatprep.subr.mxu0 0.0
    %1916 = vmatpush1.msra.mxu0 0.0
    %1917 = vmatprep.subr.mxu0 0.0
    %1918 = vmatpush1.msra.mxu0 0.0
    %1919 = vmatprep.subr.mxu0 0.0
    %1920 = vmatpush1.msra.mxu0 0.0
    %1921 = vmatprep.subr.mxu0 0.0
    %1922 = vmatpush1.msra.mxu0 0.0
    %1923 = vmatprep.subr.mxu0 0.0
    %1924 = vmatpush1.msra.mxu0 0.0
    %1925 = vmatprep.subr.mxu0 0.0
    %1926 = vmatpush1.msra.mxu0 0.0
    %1927 = vmatprep.subr.mxu0 0.0
    %1928 = vmatpush1.msra.mxu0 0.0
    %1929 = vmatprep.subr.mxu0 0.0
    %1930 = vmatpush1.msra.mxu0 0.0
    %1931 = vmatprep.subr.mxu0 0.0
    %1932 = vmatpush1.msra.mxu0 0.0
    %1933 = vmatprep.subr.mxu0 0.0
    %1934 = vmatpush1.msra.mxu0 0.0
    %1935 = vmatprep.subr.mxu0 0.0
    %1936 = vmatpush1.msra.mxu0 0.0
    %1937 = vmatprep.subr.mxu0 0.0
    %1938 = vmatpush1.msra.mxu0 0.0
    %1939 = vmatprep.subr.mxu0 0.0
    %1940 = vmatpush1.msra.mxu0 0.0
    %1941 = vmatprep.subr.mxu0 0.0
    %1942 = vmatpush1.msra.mxu0 0.0
    %1943 = vmatprep.subr.mxu0 0.0
    %1944 = vmatpush1.msra.mxu0 0.0
    %1945 = vmatprep.subr.mxu0 0.0
    %1946 = vmatpush1.msra.mxu0 0.0
    %1947 = vmatprep.subr.mxu0 0.0
    %1948 = vmatpush1.msra.mxu0 0.0
    %1949 = vmatprep.subr.mxu0 0.0
    %1950 = vmatpush1.msra.mxu0 0.0
    %1951 = vmatprep.subr.mxu0 0.0
    %1952 = vmatpush1.msra.mxu0 0.0
    %1953 = vmatprep.mubr.f32.mxu0 0.0
    %v1954 = vand.u32 %v1449, 4294901760
    %1955 = vmatmul.mubr.f32.gmra.mrb[0].mxu0 %v1954
    %v1956 = vpop.f32.mrb[0].mxu0
    %v1957 = vadd.f32 %v1876, %v1956
    %v1958 = vpop.f32.mrb[0].mxu0
    %v1959 = vadd.f32 %v1878, %v1958
    %1960 = vmatprep.mubr.f32.mxu0 0.0
    %v1961 = vand.u32 %v1452, 4294901760
    %1962 = vmatmul.mubr.f32.gmra.mrb[0].mxu0 %v1961
    %v1963 = vpop.f32.mrb[0].mxu0
    %v1964 = vadd.f32 %v1883, %v1963
    %v1965 = vpop.f32.mrb[0].mxu0
    %v1966 = vadd.f32 %v1885, %v1965
    %1967 = vdwg.mxu0
    %s1968 = scalar_lea.vmem %s2, 16
    %v1969 = vld [vmem:[%s1968] sm:$0xff]
    %v1970 = vld [vmem:[%s1968 + $0x8] sm:$0xff]
    %v1972 = vsel %vm1447, %v1443, 0
    %v1975 = vsel %vm1447, %v1444, 0
    %v1977 = vand.u32 %v1970, 4294901760
    %1978 = vmatprep.subr.mxu0 %v1977
    %v1979 = vand.u32 %v1969, 4294901760
    %1980 = vmatpush1.msra.mxu0 %v1979
    %1981 = vmatprep.subr.mxu0 0.0
    %1982 = vmatpush1.msra.mxu0 0.0
    %1983 = vmatprep.subr.mxu0 0.0
    %1984 = vmatpush1.msra.mxu0 0.0
    %1985 = vmatprep.subr.mxu0 0.0
    %1986 = vmatpush1.msra.mxu0 0.0
    %1987 = vmatprep.subr.mxu0 0.0
    %1988 = vmatpush1.msra.mxu0 0.0
    %1989 = vmatprep.subr.mxu0 0.0
    %1990 = vmatpush1.msra.mxu0 0.0
    %1991 = vmatprep.subr.mxu0 0.0
    %1992 = vmatpush1.msra.mxu0 0.0
    %1993 = vmatprep.subr.mxu0 0.0
    %1994 = vmatpush1.msra.mxu0 0.0
    %1995 = vmatprep.subr.mxu0 0.0
    %1996 = vmatpush1.msra.mxu0 0.0
    %1997 = vmatprep.subr.mxu0 0.0
    %1998 = vmatpush1.msra.mxu0 0.0
    %1999 = vmatprep.subr.mxu0 0.0
    %2000 = vmatpush1.msra.mxu0 0.0
    %2001 = vmatprep.subr.mxu0 0.0
    %2002 = vmatpush1.msra.mxu0 0.0
    %2003 = vmatprep.subr.mxu0 0.0
    %2004 = vmatpush1.msra.mxu0 0.0
    %2005 = vmatprep.subr.mxu0 0.0
    %2006 = vmatpush1.msra.mxu0 0.0
    %2007 = vmatprep.subr.mxu0 0.0
    %2008 = vmatpush1.msra.mxu0 0.0
    %2009 = vmatprep.subr.mxu0 0.0
    %2010 = vmatpush1.msra.mxu0 0.0
    %2011 = vmatprep.subr.mxu0 0.0
    %2012 = vmatpush1.msra.mxu0 0.0
    %2013 = vmatprep.subr.mxu0 0.0
    %2014 = vmatpush1.msra.mxu0 0.0
    %2015 = vmatprep.subr.mxu0 0.0
    %2016 = vmatpush1.msra.mxu0 0.0
    %2017 = vmatprep.subr.mxu0 0.0
    %2018 = vmatpush1.msra.mxu0 0.0
    %2019 = vmatprep.subr.mxu0 0.0
    %2020 = vmatpush1.msra.mxu0 0.0
    %2021 = vmatprep.subr.mxu0 0.0
    %2022 = vmatpush1.msra.mxu0 0.0
    %2023 = vmatprep.subr.mxu0 0.0
    %2024 = vmatpush1.msra.mxu0 0.0
    %2025 = vmatprep.subr.mxu0 0.0
    %2026 = vmatpush1.msra.mxu0 0.0
    %2027 = vmatprep.subr.mxu0 0.0
    %2028 = vmatpush1.msra.mxu0 0.0
    %2029 = vmatprep.subr.mxu0 0.0
    %2030 = vmatpush1.msra.mxu0 0.0
    %2031 = vmatprep.subr.mxu0 0.0
    %2032 = vmatpush1.msra.mxu0 0.0
    %2033 = vmatprep.subr.mxu0 0.0
    %2034 = vmatpush1.msra.mxu0 0.0
    %2035 = vmatprep.subr.mxu0 0.0
    %2036 = vmatpush1.msra.mxu0 0.0
    %2037 = vmatprep.subr.mxu0 0.0
    %2038 = vmatpush1.msra.mxu0 0.0
    %2039 = vmatprep.subr.mxu0 0.0
    %2040 = vmatpush1.msra.mxu0 0.0
    %2041 = vmatprep.subr.mxu0 0.0
    %2042 = vmatpush1.msra.mxu0 0.0
    %2043 = vmatprep.mubr.f32.mxu0 0.0
    %v2044 = vand.u32 %v1972, 4294901760
    %v2045 = vsub.f32 %v1972, %v2044
    %v2046 = vand.u32 %v2045, 4294901760
    %v2047 = vsub.f32 %v2045, %v2046
    %v2048 = vand.u32 %v2047, 4294901760
    %2049 = vmatmul.mubr.f32.gmra.mrb[0].mxu0 %v2048
    %v2050 = vpop.f32.mrb[0].mxu0
    %v2051 = vadd.f32 0.0, %v2050
    %v2052 = vpop.f32.mrb[0].mxu0
    %v2053 = vadd.f32 0.0, %v2052
    %2054 = vmatprep.mubr.f32.mxu0 0.0
    %v2055 = vand.u32 %v1975, 4294901760
    %v2056 = vsub.f32 %v1975, %v2055
    %v2057 = vand.u32 %v2056, 4294901760
    %v2058 = vsub.f32 %v2056, %v2057
    %v2059 = vand.u32 %v2058, 4294901760
    %2060 = vmatmul.mubr.f32.gmra.mrb[0].mxu0 %v2059
    %v2061 = vpop.f32.mrb[0].mxu0
    %v2062 = vadd.f32 0.0, %v2061
    %v2063 = vpop.f32.mrb[0].mxu0
    %v2064 = vadd.f32 0.0, %v2063
    %2065 = vdwg.mxu0
    %v2066 = vand.u32 %v1970, 4294901760
    %v2067 = vsub.f32 %v1970, %v2066
    %v2068 = vand.u32 %v2067, 4294901760
    %v2069 = vsub.f32 %v2067, %v2068
    %v2070 = vand.u32 %v2069, 4294901760
    %2071 = vmatprep.subr.mxu0 %v2070
    %v2072 = vand.u32 %v1969, 4294901760
    %v2073 = vsub.f32 %v1969, %v2072
    %v2074 = vand.u32 %v2073, 4294901760
    %v2075 = vsub.f32 %v2073, %v2074
    %v2076 = vand.u32 %v2075, 4294901760
    %2077 = vmatpush1.msra.mxu0 %v2076
    %2078 = vmatprep.subr.mxu0 0.0
    %2079 = vmatpush1.msra.mxu0 0.0
    %2080 = vmatprep.subr.mxu0 0.0
    %2081 = vmatpush1.msra.mxu0 0.0
    %2082 = vmatprep.subr.mxu0 0.0
    %2083 = vmatpush1.msra.mxu0 0.0
    %2084 = vmatprep.subr.mxu0 0.0
    %2085 = vmatpush1.msra.mxu0 0.0
    %2086 = vmatprep.subr.mxu0 0.0
    %2087 = vmatpush1.msra.mxu0 0.0
    %2088 = vmatprep.subr.mxu0 0.0
    %2089 = vmatpush1.msra.mxu0 0.0
    %2090 = vmatprep.subr.mxu0 0.0
    %2091 = vmatpush1.msra.mxu0 0.0
    %2092 = vmatprep.subr.mxu0 0.0
    %2093 = vmatpush1.msra.mxu0 0.0
    %2094 = vmatprep.subr.mxu0 0.0
    %2095 = vmatpush1.msra.mxu0 0.0
    %2096 = vmatprep.subr.mxu0 0.0
    %2097 = vmatpush1.msra.mxu0 0.0
    %2098 = vmatprep.subr.mxu0 0.0
    %2099 = vmatpush1.msra.mxu0 0.0
    %2100 = vmatprep.subr.mxu0 0.0
    %2101 = vmatpush1.msra.mxu0 0.0
    %2102 = vmatprep.subr.mxu0 0.0
    %2103 = vmatpush1.msra.mxu0 0.0
    %2104 = vmatprep.subr.mxu0 0.0
    %2105 = vmatpush1.msra.mxu0 0.0
    %2106 = vmatprep.subr.mxu0 0.0
    %2107 = vmatpush1.msra.mxu0 0.0
    %2108 = vmatprep.subr.mxu0 0.0
    %2109 = vmatpush1.msra.mxu0 0.0
    %2110 = vmatprep.subr.mxu0 0.0
    %2111 = vmatpush1.msra.mxu0 0.0
    %2112 = vmatprep.subr.mxu0 0.0
    %2113 = vmatpush1.msra.mxu0 0.0
    %2114 = vmatprep.subr.mxu0 0.0
    %2115 = vmatpush1.msra.mxu0 0.0
    %2116 = vmatprep.subr.mxu0 0.0
    %2117 = vmatpush1.msra.mxu0 0.0
    %2118 = vmatprep.subr.mxu0 0.0
    %2119 = vmatpush1.msra.mxu0 0.0
    %2120 = vmatprep.subr.mxu0 0.0
    %2121 = vmatpush1.msra.mxu0 0.0
    %2122 = vmatprep.subr.mxu0 0.0
    %2123 = vmatpush1.msra.mxu0 0.0
    %2124 = vmatprep.subr.mxu0 0.0
    %2125 = vmatpush1.msra.mxu0 0.0
    %2126 = vmatprep.subr.mxu0 0.0
    %2127 = vmatpush1.msra.mxu0 0.0
    %2128 = vmatprep.subr.mxu0 0.0
    %2129 = vmatpush1.msra.mxu0 0.0
    %2130 = vmatprep.subr.mxu0 0.0
    %2131 = vmatpush1.msra.mxu0 0.0
    %2132 = vmatprep.subr.mxu0 0.0
    %2133 = vmatpush1.msra.mxu0 0.0
    %2134 = vmatprep.subr.mxu0 0.0
    %2135 = vmatpush1.msra.mxu0 0.0
    %2136 = vmatprep.subr.mxu0 0.0
    %2137 = vmatpush1.msra.mxu0 0.0
    %2138 = vmatprep.subr.mxu0 0.0
    %2139 = vmatpush1.msra.mxu0 0.0
    %2140 = vmatprep.mubr.f32.mxu0 0.0
    %v2141 = vand.u32 %v1972, 4294901760
    %2142 = vmatmul.mubr.f32.gmra.mrb[0].mxu0 %v2141
    %v2143 = vpop.f32.mrb[0].mxu0
    %v2144 = vadd.f32 %v2051, %v2143
    %v2145 = vpop.f32.mrb[0].mxu0
    %v2146 = vadd.f32 %v2053, %v2145
    %2147 = vmatprep.mubr.f32.mxu0 0.0
    %v2148 = vand.u32 %v1975, 4294901760
    %2149 = vmatmul.mubr.f32.gmra.mrb[0].mxu0 %v2148
    %v2150 = vpop.f32.mrb[0].mxu0
    %v2151 = vadd.f32 %v2062, %v2150
    %v2152 = vpop.f32.mrb[0].mxu0
    %v2153 = vadd.f32 %v2064, %v2152
    %2154 = vdwg.mxu0
    %v2155 = vand.u32 %v1970, 4294901760
    %v2156 = vsub.f32 %v1970, %v2155
    %2157 = vmatprep.subr.mxu0 %v2156
    %v2158 = vand.u32 %v1969, 4294901760
    %v2159 = vsub.f32 %v1969, %v2158
    %2160 = vmatpush1.msra.mxu0 %v2159
    %2161 = vmatprep.subr.mxu0 0.0
    %2162 = vmatpush1.msra.mxu0 0.0
    %2163 = vmatprep.subr.mxu0 0.0
    %2164 = vmatpush1.msra.mxu0 0.0
    %2165 = vmatprep.subr.mxu0 0.0
    %2166 = vmatpush1.msra.mxu0 0.0
    %2167 = vmatprep.subr.mxu0 0.0
    %2168 = vmatpush1.msra.mxu0 0.0
    %2169 = vmatprep.subr.mxu0 0.0
    %2170 = vmatpush1.msra.mxu0 0.0
    %2171 = vmatprep.subr.mxu0 0.0
    %2172 = vmatpush1.msra.mxu0 0.0
    %2173 = vmatprep.subr.mxu0 0.0
    %2174 = vmatpush1.msra.mxu0 0.0
    %2175 = vmatprep.subr.mxu0 0.0
    %2176 = vmatpush1.msra.mxu0 0.0
    %2177 = vmatprep.subr.mxu0 0.0
    %2178 = vmatpush1.msra.mxu0 0.0
    %2179 = vmatprep.subr.mxu0 0.0
    %2180 = vmatpush1.msra.mxu0 0.0
    %2181 = vmatprep.subr.mxu0 0.0
    %2182 = vmatpush1.msra.mxu0 0.0
    %2183 = vmatprep.subr.mxu0 0.0
    %2184 = vmatpush1.msra.mxu0 0.0
    %2185 = vmatprep.subr.mxu0 0.0
    %2186 = vmatpush1.msra.mxu0 0.0
    %2187 = vmatprep.subr.mxu0 0.0
    %2188 = vmatpush1.msra.mxu0 0.0
    %2189 = vmatprep.subr.mxu0 0.0
    %2190 = vmatpush1.msra.mxu0 0.0
    %2191 = vmatprep.subr.mxu0 0.0
    %2192 = vmatpush1.msra.mxu0 0.0
    %2193 = vmatprep.subr.mxu0 0.0
    %2194 = vmatpush1.msra.mxu0 0.0
    %2195 = vmatprep.subr.mxu0 0.0
    %2196 = vmatpush1.msra.mxu0 0.0
    %2197 = vmatprep.subr.mxu0 0.0
    %2198 = vmatpush1.msra.mxu0 0.0
    %2199 = vmatprep.subr.mxu0 0.0
    %2200 = vmatpush1.msra.mxu0 0.0
    %2201 = vmatprep.subr.mxu0 0.0
    %2202 = vmatpush1.msra.mxu0 0.0
    %2203 = vmatprep.subr.mxu0 0.0
    %2204 = vmatpush1.msra.mxu0 0.0
    %2205 = vmatprep.subr.mxu0 0.0
    %2206 = vmatpush1.msra.mxu0 0.0
    %2207 = vmatprep.subr.mxu0 0.0
    %2208 = vmatpush1.msra.mxu0 0.0
    %2209 = vmatprep.subr.mxu0 0.0
    %2210 = vmatpush1.msra.mxu0 0.0
    %2211 = vmatprep.subr.mxu0 0.0
    %2212 = vmatpush1.msra.mxu0 0.0
    %2213 = vmatprep.subr.mxu0 0.0
    %2214 = vmatpush1.msra.mxu0 0.0
    %2215 = vmatprep.subr.mxu0 0.0
    %2216 = vmatpush1.msra.mxu0 0.0
    %2217 = vmatprep.subr.mxu0 0.0
    %2218 = vmatpush1.msra.mxu0 0.0
    %2219 = vmatprep.subr.mxu0 0.0
    %2220 = vmatpush1.msra.mxu0 0.0
    %2221 = vmatprep.subr.mxu0 0.0
    %2222 = vmatpush1.msra.mxu0 0.0
    %2223 = vmatprep.mubr.f32.mxu0 0.0
    %v2224 = vand.u32 %v1972, 4294901760
    %v2225 = vsub.f32 %v1972, %v2224
    %2226 = vmatmul.mubr.f32.gmra.mrb[0].mxu0 %v2225
    %v2227 = vpop.f32.mrb[0].mxu0
    %v2228 = vadd.f32 %v2144, %v2227
    %v2229 = vpop.f32.mrb[0].mxu0
    %v2230 = vadd.f32 %v2146, %v2229
    %2231 = vmatprep.mubr.f32.mxu0 0.0
    %v2232 = vand.u32 %v1975, 4294901760
    %v2233 = vsub.f32 %v1975, %v2232
    %2234 = vmatmul.mubr.f32.gmra.mrb[0].mxu0 %v2233
    %v2235 = vpop.f32.mrb[0].mxu0
    %v2236 = vadd.f32 %v2151, %v2235
    %v2237 = vpop.f32.mrb[0].mxu0
    %v2238 = vadd.f32 %v2153, %v2237
    %2239 = vdwg.mxu0
    %v2240 = vand.u32 %v1970, 4294901760
    %2241 = vmatprep.subr.mxu0 %v2240
    %v2242 = vand.u32 %v1969, 4294901760
    %2243 = vmatpush1.msra.mxu0 %v2242
    %2244 = vmatprep.subr.mxu0 0.0
    %2245 = vmatpush1.msra.mxu0 0.0
    %2246 = vmatprep.subr.mxu0 0.0
    %2247 = vmatpush1.msra.mxu0 0.0
    %2248 = vmatprep.subr.mxu0 0.0
    %2249 = vmatpush1.msra.mxu0 0.0
    %2250 = vmatprep.subr.mxu0 0.0
    %2251 = vmatpush1.msra.mxu0 0.0
    %2252 = vmatprep.subr.mxu0 0.0
    %2253 = vmatpush1.msra.mxu0 0.0
    %2254 = vmatprep.subr.mxu0 0.0
    %2255 = vmatpush1.msra.mxu0 0.0
    %2256 = vmatprep.subr.mxu0 0.0
    %2257 = vmatpush1.msra.mxu0 0.0
    %2258 = vmatprep.subr.mxu0 0.0
    %2259 = vmatpush1.msra.mxu0 0.0
    %2260 = vmatprep.subr.mxu0 0.0
    %2261 = vmatpush1.msra.mxu0 0.0
    %2262 = vmatprep.subr.mxu0 0.0
    %2263 = vmatpush1.msra.mxu0 0.0
    %2264 = vmatprep.subr.mxu0 0.0
    %2265 = vmatpush1.msra.mxu0 0.0
    %2266 = vmatprep.subr.mxu0 0.0
    %2267 = vmatpush1.msra.mxu0 0.0
    %2268 = vmatprep.subr.mxu0 0.0
    %2269 = vmatpush1.msra.mxu0 0.0
    %2270 = vmatprep.subr.mxu0 0.0
    %2271 = vmatpush1.msra.mxu0 0.0
    %2272 = vmatprep.subr.mxu0 0.0
    %2273 = vmatpush1.msra.mxu0 0.0
    %2274 = vmatprep.subr.mxu0 0.0
    %2275 = vmatpush1.msra.mxu0 0.0
    %2276 = vmatprep.subr.mxu0 0.0
    %2277 = vmatpush1.msra.mxu0 0.0
    %2278 = vmatprep.subr.mxu0 0.0
    %2279 = vmatpush1.msra.mxu0 0.0
    %2280 = vmatprep.subr.mxu0 0.0
    %2281 = vmatpush1.msra.mxu0 0.0
    %2282 = vmatprep.subr.mxu0 0.0
    %2283 = vmatpush1.msra.mxu0 0.0
    %2284 = vmatprep.subr.mxu0 0.0
    %2285 = vmatpush1.msra.mxu0 0.0
    %2286 = vmatprep.subr.mxu0 0.0
    %2287 = vmatpush1.msra.mxu0 0.0
    %2288 = vmatprep.subr.mxu0 0.0
    %2289 = vmatpush1.msra.mxu0 0.0
    %2290 = vmatprep.subr.mxu0 0.0
    %2291 = vmatpush1.msra.mxu0 0.0
    %2292 = vmatprep.subr.mxu0 0.0
    %2293 = vmatpush1.msra.mxu0 0.0
    %2294 = vmatprep.subr.mxu0 0.0
    %2295 = vmatpush1.msra.mxu0 0.0
    %2296 = vmatprep.subr.mxu0 0.0
    %2297 = vmatpush1.msra.mxu0 0.0
    %2298 = vmatprep.subr.mxu0 0.0
    %2299 = vmatpush1.msra.mxu0 0.0
    %2300 = vmatprep.subr.mxu0 0.0
    %2301 = vmatpush1.msra.mxu0 0.0
    %2302 = vmatprep.subr.mxu0 0.0
    %2303 = vmatpush1.msra.mxu0 0.0
    %2304 = vmatprep.subr.mxu0 0.0
    %2305 = vmatpush1.msra.mxu0 0.0
    %2306 = vmatprep.mubr.f32.mxu0 0.0
    %v2307 = vand.u32 %v1972, 4294901760
    %v2308 = vsub.f32 %v1972, %v2307
    %v2309 = vand.u32 %v2308, 4294901760
    %2310 = vmatmul.mubr.f32.gmra.mrb[0].mxu0 %v2309
    %v2311 = vpop.f32.mrb[0].mxu0
    %v2312 = vadd.f32 %v2228, %v2311
    %v2313 = vpop.f32.mrb[0].mxu0
    %v2314 = vadd.f32 %v2230, %v2313
    %2315 = vmatprep.mubr.f32.mxu0 0.0
    %v2316 = vand.u32 %v1975, 4294901760
    %v2317 = vsub.f32 %v1975, %v2316
    %v2318 = vand.u32 %v2317, 4294901760
    %2319 = vmatmul.mubr.f32.gmra.mrb[0].mxu0 %v2318
    %v2320 = vpop.f32.mrb[0].mxu0
    %v2321 = vadd.f32 %v2236, %v2320
    %v2322 = vpop.f32.mrb[0].mxu0
    %v2323 = vadd.f32 %v2238, %v2322
    %2324 = vdwg.mxu0
    %v2325 = vand.u32 %v1970, 4294901760
    %v2326 = vsub.f32 %v1970, %v2325
    %v2327 = vand.u32 %v2326, 4294901760
    %2328 = vmatprep.subr.mxu0 %v2327
    %v2329 = vand.u32 %v1969, 4294901760
    %v2330 = vsub.f32 %v1969, %v2329
    %v2331 = vand.u32 %v2330, 4294901760
    %2332 = vmatpush1.msra.mxu0 %v2331
    %2333 = vmatprep.subr.mxu0 0.0
    %2334 = vmatpush1.msra.mxu0 0.0
    %2335 = vmatprep.subr.mxu0 0.0
    %2336 = vmatpush1.msra.mxu0 0.0
    %2337 = vmatprep.subr.mxu0 0.0
    %2338 = vmatpush1.msra.mxu0 0.0
    %2339 = vmatprep.subr.mxu0 0.0
    %2340 = vmatpush1.msra.mxu0 0.0
    %2341 = vmatprep.subr.mxu0 0.0
    %2342 = vmatpush1.msra.mxu0 0.0
    %2343 = vmatprep.subr.mxu0 0.0
    %2344 = vmatpush1.msra.mxu0 0.0
    %2345 = vmatprep.subr.mxu0 0.0
    %2346 = vmatpush1.msra.mxu0 0.0
    %2347 = vmatprep.subr.mxu0 0.0
    %2348 = vmatpush1.msra.mxu0 0.0
    %2349 = vmatprep.subr.mxu0 0.0
    %2350 = vmatpush1.msra.mxu0 0.0
    %2351 = vmatprep.subr.mxu0 0.0
    %2352 = vmatpush1.msra.mxu0 0.0
    %2353 = vmatprep.subr.mxu0 0.0
    %2354 = vmatpush1.msra.mxu0 0.0
    %2355 = vmatprep.subr.mxu0 0.0
    %2356 = vmatpush1.msra.mxu0 0.0
    %2357 = vmatprep.subr.mxu0 0.0
    %2358 = vmatpush1.msra.mxu0 0.0
    %2359 = vmatprep.subr.mxu0 0.0
    %2360 = vmatpush1.msra.mxu0 0.0
    %2361 = vmatprep.subr.mxu0 0.0
    %2362 = vmatpush1.msra.mxu0 0.0
    %2363 = vmatprep.subr.mxu0 0.0
    %2364 = vmatpush1.msra.mxu0 0.0
    %2365 = vmatprep.subr.mxu0 0.0
    %2366 = vmatpush1.msra.mxu0 0.0
    %2367 = vmatprep.subr.mxu0 0.0
    %2368 = vmatpush1.msra.mxu0 0.0
    %2369 = vmatprep.subr.mxu0 0.0
    %2370 = vmatpush1.msra.mxu0 0.0
    %2371 = vmatprep.subr.mxu0 0.0
    %2372 = vmatpush1.msra.mxu0 0.0
    %2373 = vmatprep.subr.mxu0 0.0
    %2374 = vmatpush1.msra.mxu0 0.0
    %2375 = vmatprep.subr.mxu0 0.0
    %2376 = vmatpush1.msra.mxu0 0.0
    %2377 = vmatprep.subr.mxu0 0.0
    %2378 = vmatpush1.msra.mxu0 0.0
    %2379 = vmatprep.subr.mxu0 0.0
    %2380 = vmatpush1.msra.mxu0 0.0
    %2381 = vmatprep.subr.mxu0 0.0
    %2382 = vmatpush1.msra.mxu0 0.0
    %2383 = vmatprep.subr.mxu0 0.0
    %2384 = vmatpush1.msra.mxu0 0.0
    %2385 = vmatprep.subr.mxu0 0.0
    %2386 = vmatpush1.msra.mxu0 0.0
    %2387 = vmatprep.subr.mxu0 0.0
    %2388 = vmatpush1.msra.mxu0 0.0
    %2389 = vmatprep.subr.mxu0 0.0
    %2390 = vmatpush1.msra.mxu0 0.0
    %2391 = vmatprep.subr.mxu0 0.0
    %2392 = vmatpush1.msra.mxu0 0.0
    %2393 = vmatprep.subr.mxu0 0.0
    %2394 = vmatpush1.msra.mxu0 0.0
    %2395 = vmatprep.mubr.f32.mxu0 0.0
    %v2396 = vand.u32 %v1972, 4294901760
    %2397 = vmatmul.mubr.f32.gmra.mrb[0].mxu0 %v2396
    %v2398 = vpop.f32.mrb[0].mxu0
    %v2399 = vadd.f32 %v2312, %v2398
    %v2400 = vpop.f32.mrb[0].mxu0
    %v2401 = vadd.f32 %v2314, %v2400
    %2402 = vmatprep.mubr.f32.mxu0 0.0
    %v2403 = vand.u32 %v1975, 4294901760
    %2404 = vmatmul.mubr.f32.gmra.mrb[0].mxu0 %v2403
    %v2405 = vpop.f32.mrb[0].mxu0
    %v2406 = vadd.f32 %v2321, %v2405
    %v2407 = vpop.f32.mrb[0].mxu0
    %v2408 = vadd.f32 %v2323, %v2407
    %2409 = vdwg.mxu0
    %v2410 = vand.u32 %v1970, 4294901760
    %2411 = vmatprep.subr.mxu0 %v2410
    %v2412 = vand.u32 %v1969, 4294901760
    %2413 = vmatpush1.msra.mxu0 %v2412
    %2414 = vmatprep.subr.mxu0 0.0
    %2415 = vmatpush1.msra.mxu0 0.0
    %2416 = vmatprep.subr.mxu0 0.0
    %2417 = vmatpush1.msra.mxu0 0.0
    %2418 = vmatprep.subr.mxu0 0.0
    %2419 = vmatpush1.msra.mxu0 0.0
    %2420 = vmatprep.subr.mxu0 0.0
    %2421 = vmatpush1.msra.mxu0 0.0
    %2422 = vmatprep.subr.mxu0 0.0
    %2423 = vmatpush1.msra.mxu0 0.0
    %2424 = vmatprep.subr.mxu0 0.0
    %2425 = vmatpush1.msra.mxu0 0.0
    %2426 = vmatprep.subr.mxu0 0.0
    %2427 = vmatpush1.msra.mxu0 0.0
    %2428 = vmatprep.subr.mxu0 0.0
    %2429 = vmatpush1.msra.mxu0 0.0
    %2430 = vmatprep.subr.mxu0 0.0
    %2431 = vmatpush1.msra.mxu0 0.0
    %2432 = vmatprep.subr.mxu0 0.0
    %2433 = vmatpush1.msra.mxu0 0.0
    %2434 = vmatprep.subr.mxu0 0.0
    %2435 = vmatpush1.msra.mxu0 0.0
    %2436 = vmatprep.subr.mxu0 0.0
    %2437 = vmatpush1.msra.mxu0 0.0
    %2438 = vmatprep.subr.mxu0 0.0
    %2439 = vmatpush1.msra.mxu0 0.0
    %2440 = vmatprep.subr.mxu0 0.0
    %2441 = vmatpush1.msra.mxu0 0.0
    %2442 = vmatprep.subr.mxu0 0.0
    %2443 = vmatpush1.msra.mxu0 0.0
    %2444 = vmatprep.subr.mxu0 0.0
    %2445 = vmatpush1.msra.mxu0 0.0
    %2446 = vmatprep.subr.mxu0 0.0
    %2447 = vmatpush1.msra.mxu0 0.0
    %2448 = vmatprep.subr.mxu0 0.0
    %2449 = vmatpush1.msra.mxu0 0.0
    %2450 = vmatprep.subr.mxu0 0.0
    %2451 = vmatpush1.msra.mxu0 0.0
    %2452 = vmatprep.subr.mxu0 0.0
    %2453 = vmatpush1.msra.mxu0 0.0
    %2454 = vmatprep.subr.mxu0 0.0
    %2455 = vmatpush1.msra.mxu0 0.0
    %2456 = vmatprep.subr.mxu0 0.0
    %2457 = vmatpush1.msra.mxu0 0.0
    %2458 = vmatprep.subr.mxu0 0.0
    %2459 = vmatpush1.msra.mxu0 0.0
    %2460 = vmatprep.subr.mxu0 0.0
    %2461 = vmatpush1.msra.mxu0 0.0
    %2462 = vmatprep.subr.mxu0 0.0
    %2463 = vmatpush1.msra.mxu0 0.0
    %2464 = vmatprep.subr.mxu0 0.0
    %2465 = vmatpush1.msra.mxu0 0.0
    %2466 = vmatprep.subr.mxu0 0.0
    %2467 = vmatpush1.msra.mxu0 0.0
    %2468 = vmatprep.subr.mxu0 0.0
    %2469 = vmatpush1.msra.mxu0 0.0
    %2470 = vmatprep.subr.mxu0 0.0
    %2471 = vmatpush1.msra.mxu0 0.0
    %2472 = vmatprep.subr.mxu0 0.0
    %2473 = vmatpush1.msra.mxu0 0.0
    %2474 = vmatprep.subr.mxu0 0.0
    %2475 = vmatpush1.msra.mxu0 0.0
    %2476 = vmatprep.mubr.f32.mxu0 0.0
    %v2477 = vand.u32 %v1972, 4294901760
    %2478 = vmatmul.mubr.f32.gmra.mrb[0].mxu0 %v2477
    %v2479 = vpop.f32.mrb[0].mxu0
    %v2480 = vadd.f32 %v2399, %v2479
    %v2481 = vpop.f32.mrb[0].mxu0
    %v2482 = vadd.f32 %v2401, %v2481
    %2483 = vmatprep.mubr.f32.mxu0 0.0
    %v2484 = vand.u32 %v1975, 4294901760
    %2485 = vmatmul.mubr.f32.gmra.mrb[0].mxu0 %v2484
    %v2486 = vpop.f32.mrb[0].mxu0
    %v2487 = vadd.f32 %v2406, %v2486
    %v2488 = vpop.f32.mrb[0].mxu0
    %v2489 = vadd.f32 %v2408, %v2488
    %2490 = vdwg.mxu0
    %v2491 = vmul.f32 %v21, %v1957
    %v2492 = vmul.f32 %v22, %v1964
    %v2493 = vadd.f32 %v2491, %v2480
    %v2494 = vadd.f32 %v2492, %v2487
    %v2495 = vmul.f32 %v21, %v1959
    %v2496 = vmul.f32 %v22, %v1966
    %v2497 = vadd.f32 %v2495, %v2482
    %v2498 = vadd.f32 %v2496, %v2489
    %v2499 = vld [vmem:[%s3] sm:$0x1]
    %v2500 = vmul.f32 %v2493, %v2493
    %v2501 = vmul.f32 %v2494, %v2494
    %v2502 = vmul.f32 %v2497, %v2497
    %v2503 = vmul.f32 %v2498, %v2498
    %v2504 = vadd.f32 %v2500, %v2502
    %v2505 = vadd.f32 %v2501, %v2503
    %vm2506 = vcmp.lt.f32.partialorder %v2504, 0.00999999
    %vm2507 = vcmp.lt.f32.partialorder %v2505, 0.00999999
    %v2509 = vlaneseq
    %v2510 = vshrl.u32 %v2509, 7
    %v2511 = vsub.s32 0, %v2510
    %v2512 = vrot.slane %v2499, %v2511
    %v2514 = vadd.f32 %v2493, %v2512
    %v2515 = vadd.f32 %v2494, %v2512
    %v2516 = vsel %vm2506, %v2514, %v2493
    %v2517 = vsel %vm2507, %v2515, %v2494
    %v2518 = vadd.f32 %v2497, %v2512
    %v2519 = vadd.f32 %v2498, %v2512
    %v2520 = vsel %vm2506, %v2518, %v2497
    %v2521 = vsel %vm2507, %v2519, %v2498
    %v2522 = vmul.f32 %v2516, %v2516
    %v2523 = vmul.f32 %v2517, %v2517
    %v2524 = vmul.f32 %v2520, %v2520
    %v2525 = vmul.f32 %v2521, %v2521
    %v2526 = vadd.f32 %v2522, %v2524
    %v2527 = vadd.f32 %v2523, %v2525
    %v2528 = vadd.f32 %v2526, 1e-08
    %v2529 = vadd.f32 %v2527, 1e-08
    %v2530 = vrsqrt.pop %v2528
    %v2531 = vrsqrt.pop %v2529
    %v2532 = vmul.f32 %v2516, %v2530
    %v2533 = vmul.f32 %v2517, %v2531
    %2534 = vst [vmem:[#allocation2] sm:$0xff] %v2532
    %2535 = vst [vmem:[#allocation2 + $0x8] sm:$0xff] %v2533
    %v2536 = vmul.f32 %v2520, %v2530
    %v2537 = vmul.f32 %v2521, %v2531
    %2538 = vst [vmem:[#allocation4] sm:$0xff] %v2536
    %2539 = vst [vmem:[#allocation4 + $0x8] sm:$0xff] %v2537
    // Predicated region
    $region18: #{tpu_custom_call.1} parent=1 // pred_check
      _
    $region19: #{tpu_custom_call.1} parent=1 // pred_check_branch
      %2541 = sbr.rel (0) target = $region21
    $region20: #{tpu_custom_call.1} parent=1 // pred_region
      %s2543 = ssub.s32 256, 256
      %2544 = vsyncadd [#allocation3], %s2543
      %s2545 = sshll.u32 [#allocation2], 4
      %s2546 = int_to_ptr.vmem [resolvable:$true] %s2545
      %2551 = dma.vmem_to_hbm [thread:$0]  %s2546, 256, %s4, [#allocation3], 128, 128, 8
    $region21: #{tpu_custom_call.1} parent=1 // pred_fallthru
      _
    // Predicated region
    $region22: #{tpu_custom_call.1} parent=1 // pred_check
      _
    $region23: #{tpu_custom_call.1} parent=1 // pred_check_branch
      %2553 = sbr.rel (0) target = $region25
    $region24: #{tpu_custom_call.1} parent=1 // pred_region
      %s2555 = ssub.s32 256, 256
      %2556 = vsyncadd [#allocation5], %s2555
      %s2557 = sshll.u32 [#allocation4], 4
      %s2558 = int_to_ptr.vmem [resolvable:$true] %s2557
      %2563 = dma.vmem_to_hbm [thread:$0]  %s2558, 256, %s5, [#allocation5], 128, 128, 8
    $region25: #{tpu_custom_call.1} parent=1 // pred_fallthru
      _
    // Predicated region
    $region26: #{tpu_custom_call.1} parent=1 // pred_check
      _
    $region27: #{tpu_custom_call.1} parent=1 // pred_check_branch
      %2565 = sbr.rel (0) target = $region29
    $region28: #{tpu_custom_call.1} parent=1 // pred_region
      %2566 = dma.done [#allocation3], 256
    $region29: #{tpu_custom_call.1} parent=1 // pred_fallthru
      _
    // Predicated region
    $region30: #{tpu_custom_call.1} parent=1 // pred_check
      _
    $region31: #{tpu_custom_call.1} parent=1 // pred_check_branch
      %2568 = sbr.rel (0) target = $region33
    $region32: #{tpu_custom_call.1} parent=1 // pred_region
      %2569 = dma.done [#allocation5], 256
    $region33: #{tpu_custom_call.1} parent=1 // pred_fallthru
      _
    %2570 = vsyncpa [#allocation3], 1
    %2571 = vsyncpa [#allocation5], 1

</llo_original>
